<compile_context>
chip_gen: v7x
topology: tpu7x:2x2x1
jax: 0.10.0
libtpu: 0.0.40
codegen_flags: <defaults>
</compile_context>

<pallas_src>
import functools
import math

import jax
import jax.numpy as jnp
from jax.experimental import pallas as pl
from jax.experimental.pallas import tpu as pltpu


# ----------------------------------------------------------------------------
# Fused Pallas kernel: grid = (B, L, T); one (layer, attention-type) block of
# one batch element per step.  feats/acc carried in VMEM scratch.
# ----------------------------------------------------------------------------
def _speaker_trm_kernel(x_ref, spkq_ref, spkk_ref, padq_ref, padk_ref,
                        wqkv_ref, bqkv_ref, wo_ref, bo_ref,
                        w1_ref, b1_ref, w2_ref, b2_ref,
                        ln1w_ref, ln1b_ref, ln2w_ref, ln2b_ref,
                        nw_ref, nb_ref,
                        o_ref,
                        feats_ref, acc_ref,
                        *, n_heads, window, attn_type):
    l = pl.program_id(1)
    t = pl.program_id(2)
    n_l = pl.num_programs(1)
    n_t = pl.num_programs(2)

    S = x_ref.shape[1]
    D = x_ref.shape[2]
    H = n_heads
    hd = D // H

    def layer_norm(h, w, b):
        mu = jnp.mean(h, axis=-1, keepdims=True)
        var = jnp.mean((h - mu) ** 2, axis=-1, keepdims=True)
        return (h - mu) * jax.lax.rsqrt(var + 1e-5) * w + b

    # ---- carry init -------------------------------------------------------
    @pl.when(jnp.logical_and(l == 0, t == 0))
    def _():
        feats_ref[...] = x_ref[0].astype(jnp.float32)

    @pl.when(t == 0)
    def _():
        acc_ref[...] = jnp.zeros_like(acc_ref)

    # ---- build additive attention bias in-kernel from O(S) metadata -------
    rows = jax.lax.broadcasted_iota(jnp.int32, (S, S), 0)
    cols = jax.lax.broadcasted_iota(jnp.int32, (S, S), 1)
    spk_q = spkq_ref[0]                      # (S, 1) f32 speaker ids (query side)
    spk_k = spkk_ref[0]                      # (1, S) f32 speaker ids (key side)
    diff = spk_q - spk_k                     # (S, S)

    one = jnp.float32(1.0)
    zero = jnp.float32(0.0)
    base = jnp.zeros((S, S), jnp.float32)    # 1.0 = masked
    for i, name in enumerate(attn_type):     # static unroll; runtime select on t
        if name == "global":
            m = jnp.zeros((S, S), jnp.float32)
        elif name == "intra":
            m = jnp.where(diff != 0.0, one, zero)
        elif name == "inter":
            m = jnp.where(jnp.logical_and(diff == 0.0, rows != cols), one, zero)
        elif name == "local":
            m = jnp.where(jnp.abs(rows - cols) >= window, one, zero)
        else:
            raise ValueError(name)
        sel = jnp.where(t == i, one, zero)   # scalar select, no bool broadcast
        base = base + sel * m

    pad_q = padq_ref[0]                      # (S, 1) f32, 1.0 = padded query
    pad_k = padk_ref[0]                      # (1, S) f32, 1.0 = padded key
    # non-padded query rows: base OR key-padding; padded query rows: key-padding
    masked = pad_q * pad_k + (one - pad_q) * jnp.maximum(base, pad_k)   # (S, S)
    bias = masked * jnp.float32(-1e9)

    # ---- one encoder layer of this attention type -------------------------
    feats = feats_ref[...]                                          # (S, D) f32

    # fused QKV projection: (S, D) @ (D, 3D), full-depth MXU contraction
    qkv = jnp.dot(feats.astype(jnp.bfloat16), wqkv_ref[0, 0],
                  preferred_element_type=jnp.float32) + bqkv_ref[0, 0]   # (S, 3D)

    ctx_parts = []
    for h in range(H):                                              # static unroll
        qh = qkv[:, h * hd:(h + 1) * hd].astype(jnp.bfloat16)       # (S, hd)
        kh = qkv[:, D + h * hd:D + (h + 1) * hd].astype(jnp.bfloat16)
        vh = qkv[:, 2 * D + h * hd:2 * D + (h + 1) * hd].astype(jnp.bfloat16)

        # scores = q @ k^T (scale already folded into Wq/bq at pack time)
        s = jax.lax.dot_general(qh, kh, (((1,), (1,)), ((), ())),
                                preferred_element_type=jnp.float32)  # (S, S)
        s = s + bias
        s = s - jnp.max(s, axis=-1, keepdims=True)
        p = jnp.exp(s)
        a = p * pl.reciprocal(jnp.sum(p, axis=-1, keepdims=True), approx=True)

        ctx_parts.append(jnp.dot(a.astype(jnp.bfloat16), vh,
                                 preferred_element_type=jnp.float32))  # (S, hd)

    ctx = jnp.concatenate(ctx_parts, axis=1)                         # (S, D) f32

    # output projection: one full-depth (S, D) @ (D, D) matmul
    attn = jnp.dot(ctx.astype(jnp.bfloat16), wo_ref[0, 0],
                   preferred_element_type=jnp.float32) + bo_ref[0, 0]

    # residual + LayerNorm1 (post-norm, PyTorch default)
    h1 = layer_norm(feats + attn, ln1w_ref[0, 0], ln1b_ref[0, 0])

    # FFN: linear2(relu(linear1(h1)))
    f = jnp.dot(h1.astype(jnp.bfloat16), w1_ref[0, 0],
                preferred_element_type=jnp.float32) + b1_ref[0, 0]
    f = jnp.maximum(f, 0.0)
    f = jnp.dot(f.astype(jnp.bfloat16), w2_ref[0, 0],
                preferred_element_type=jnp.float32) + b2_ref[0, 0]

    # residual + LayerNorm2
    h2 = layer_norm(h1 + f, ln2w_ref[0, 0], ln2b_ref[0, 0])

    acc_ref[...] = acc_ref[...] + h2

    # ---- finalize layer / whole forward ------------------------------------
    @pl.when(t == n_t - 1)
    def _():
        feats_ref[...] = acc_ref[...]

    @pl.when(jnp.logical_and(l == n_l - 1, t == n_t - 1))
    def _():
        out = layer_norm(acc_ref[...], nw_ref[...], nb_ref[...])
        o_ref[0] = out.astype(o_ref.dtype)


_PARAM_ORDER = ("wqkv", "bqkv", "wo", "bo", "w1", "b1", "w2", "b2",
                "ln1w", "ln1b", "ln2w", "ln2b", "normw", "normb")


# ----------------------------------------------------------------------------
# Wrapper
# ----------------------------------------------------------------------------
def speaker_trm_forward(packed, inputs_sbd, src_key_padding_mask, speaker_ids_sb,
                        *, layers, n_heads, window,
                        attn_type=("global", "intra", "inter", "local")):
    # inputs_sbd: (S, B, D) seq-first like PyTorch; returns (S, B, D).
    x = jnp.transpose(inputs_sbd, (1, 0, 2)).astype(jnp.float32)   # (B, S, D)
    B, S, D = x.shape
    T = len(attn_type)
    L = layers

    # O(S) per-batch metadata in both orientations (avoids in-kernel transposes)
    sp = speaker_ids_sb.T.astype(jnp.float32)                      # (B, S)
    pad = src_key_padding_mask.astype(jnp.float32)                 # (B, S)
    spk_q = sp[:, :, None]                                         # (B, S, 1)
    spk_k = sp[:, None, :]                                         # (B, 1, S)
    pad_q = pad[:, :, None]                                        # (B, S, 1)
    pad_k = pad[:, None, :]                                        # (B, 1, S)

    param_args = [packed[k] for k in _PARAM_ORDER]

    def batch_spec(shape):                    # indexed by b only
        zeros = (0,) * (len(shape) - 1)
        return pl.BlockSpec((1,) + tuple(shape[1:]), lambda b, l, t: (b,) + zeros)

    def lt_spec(shape):                       # streamed per (layer, type)
        tail = (0,) * (len(shape) - 2)
        return pl.BlockSpec((1, 1) + tuple(shape[2:]), lambda b, l, t: (l, t) + tail)

    def const_spec(shape):                    # grid-invariant (tiny)
        zeros = (0,) * len(shape)
        return pl.BlockSpec(tuple(shape), lambda b, l, t: zeros)

    in_specs = ([batch_spec(x.shape),
                 batch_spec(spk_q.shape), batch_spec(spk_k.shape),
                 batch_spec(pad_q.shape), batch_spec(pad_k.shape)]
                + [lt_spec(a.shape) for a in param_args[:-2]]
                + [const_spec(a.shape) for a in param_args[-2:]])

    kernel = functools.partial(_speaker_trm_kernel, n_heads=n_heads,
                               window=window, attn_type=tuple(attn_type))

    out = pl.pallas_call(
        kernel,
        out_shape=jax.ShapeDtypeStruct((B, S, D), jnp.float32),
        grid=(B, L, T),
        in_specs=in_specs,
        out_specs=pl.BlockSpec((1, S, D), lambda b, l, t: (b, 0, 0)),
        scratch_shapes=[pltpu.VMEM((S, D), jnp.float32),   # feats carry
                        pltpu.VMEM((S, D), jnp.float32)],  # per-layer type accumulator
        compiler_params=pltpu.CompilerParams(
            dimension_semantics=("parallel", "arbitrary", "arbitrary"),
            # streamed weights keep the per-step working set small; 32 MiB is a
            # safe explicit ceiling on v5e / v6e / v7x.
            vmem_limit_bytes=32 * 1024 * 1024),
    )(x, spk_q, spk_k, pad_q, pad_k, *param_args)

    return jnp.transpose(out, (1, 0, 2))                            # (S, B, D)


# ----------------------------------------------------------------------------
# Parameter init (mirrors PyTorch module shapes) and host-side packing:
# stack over (layers, types), pre-transpose to x @ W layout, fuse QKV into one
# (D, 3D) slab with 1/sqrt(hd) folded into the Q columns, cast matmul weights
# to bf16.
# ----------------------------------------------------------------------------
def init_layer_params(key, d_model, ff_dim):
    ks = jax.random.split(key, 8)
    s = 0.1
    return dict(
        wqkv=jax.random.normal(ks[0], (3 * d_model, d_model), jnp.float32) * s,
        bqkv=jax.random.normal(ks[1], (3 * d_model,), jnp.float32) * s,
        wo=jax.random.normal(ks[2], (d_model, d_model), jnp.float32) * s,
        bo=jax.random.normal(ks[3], (d_model,), jnp.float32) * s,
        w1=jax.random.normal(ks[4], (ff_dim, d_model), jnp.float32) * s,
        b1=jax.random.normal(ks[5], (ff_dim,), jnp.float32) * s,
        w2=jax.random.normal(ks[6], (d_model, ff_dim), jnp.float32) * s,
        b2=jax.random.normal(ks[7], (d_model,), jnp.float32) * s,
        ln1w=jnp.ones((d_model,), jnp.float32),
        ln1b=jnp.zeros((d_model,), jnp.float32),
        ln2w=jnp.ones((d_model,), jnp.float32),
        ln2b=jnp.zeros((d_model,), jnp.float32),
    )


def init_speaker_trm_params(key, layers, d_model, ff_dim,
                            attn_type=("global", "intra", "inter", "local")):
    params = {}
    for t in attn_type:
        key, sub = jax.random.split(key)
        lkeys = jax.random.split(sub, layers)
        params[t] = [init_layer_params(lkeys[l], d_model, ff_dim) for l in range(layers)]
    params["norm_w"] = jnp.ones((d_model,), jnp.float32)
    params["norm_b"] = jnp.zeros((d_model,), jnp.float32)
    return params


def pack_params(params, layers, attn_type, n_heads):
    D = params[attn_type[0]][0]["wo"].shape[0]
    hd = D // n_heads
    scale = 1.0 / math.sqrt(hd)

    def stack(fn):
        return jnp.stack([jnp.stack([fn(params[t][l]) for t in attn_type])
                          for l in range(layers)])

    def qkv_w(p):
        w = p["wqkv"].T                         # (D, 3D), columns [q | k | v]
        w = w.at[:, :D].multiply(scale)         # fold 1/sqrt(hd) into Q columns
        return w.astype(jnp.bfloat16)

    def qkv_b(p):
        b = p["bqkv"].at[:D].multiply(scale)
        return b[None, :]                       # (1, 3D) f32

    return dict(
        wqkv=stack(qkv_w),                                         # (L,T,D,3D) bf16
        bqkv=stack(qkv_b),                                          # (L,T,1,3D) f32
        wo=stack(lambda p: p["wo"].T.astype(jnp.bfloat16)),         # (L,T,D,D) bf16
        bo=stack(lambda p: p["bo"][None, :]),                       # (L,T,1,D)
        w1=stack(lambda p: p["w1"].T.astype(jnp.bfloat16)),         # (L,T,D,F) bf16
        b1=stack(lambda p: p["b1"][None, :]),                       # (L,T,1,F)
        w2=stack(lambda p: p["w2"].T.astype(jnp.bfloat16)),         # (L,T,F,D) bf16
        b2=stack(lambda p: p["b2"][None, :]),                       # (L,T,1,D)
        ln1w=stack(lambda p: p["ln1w"][None, :]),
        ln1b=stack(lambda p: p["ln1b"][None, :]),
        ln2w=stack(lambda p: p["ln2w"][None, :]),
        ln2b=stack(lambda p: p["ln2b"][None, :]),
        normw=params["norm_w"][None, :],                            # (1, D)
        normb=params["norm_b"][None, :],
    )


# ----------------------------------------------------------------------------
# Main
# ----------------------------------------------------------------------------
if __name__ == "__main__":
    LAYERS = 2
    IN_DIM = 32
    N_HEADS = 4
    FF_DIM = 64
    WINDOW = 3
    S, B = 8, 2
    ATTN_TYPE = ("global", "intra", "inter", "local")

    root = jax.random.PRNGKey(0)
    k_in, k_spk, k_par = jax.random.split(root, 3)

    inputs = jax.random.normal(k_in, (S, B, IN_DIM), jnp.float32)        # (S, B, D)
    speaker_ids = jax.random.randint(k_spk, (S, B), 0, 2, jnp.int32)     # (S, B)
    src_key_padding_mask = jnp.array(
        [[False] * 6 + [True] * 2,
         [False] * 7 + [True] * 1], dtype=bool)                          # (B, S)

    params = init_speaker_trm_params(k_par, LAYERS, IN_DIM, FF_DIM, ATTN_TYPE)
    packed = pack_params(params, LAYERS, ATTN_TYPE, N_HEADS)             # packed once, host-side

    fwd = jax.jit(functools.partial(
        speaker_trm_forward, layers=LAYERS, n_heads=N_HEADS, window=WINDOW,
        attn_type=ATTN_TYPE))

    out = fwd(packed, inputs, src_key_padding_mask, speaker_ids)
    out = jax.block_until_ready(out)

    assert out.shape == (S, B, IN_DIM)
    assert bool(jnp.all(jnp.isfinite(out)))
    print("KERNEL_OK")
</pallas_src>

<mosaic_0001>
module attributes {stable_mosaic.version = 11 : i64} {
  func.func @_speaker_trm_kernel(%arg0: i32, %arg1: i32, %arg2: i32, %arg3: memref<1x8x32xf32, #tpu.memory_space<vmem>>, %arg4: memref<1x8x1xf32, #tpu.memory_space<vmem>>, %arg5: memref<1x1x8xf32, #tpu.memory_space<vmem>>, %arg6: memref<1x8x1xf32, #tpu.memory_space<vmem>>, %arg7: memref<1x1x8xf32, #tpu.memory_space<vmem>>, %arg8: memref<1x1x32x96xbf16, #tpu.memory_space<vmem>>, %arg9: memref<1x1x1x96xf32, #tpu.memory_space<vmem>>, %arg10: memref<1x1x32x32xbf16, #tpu.memory_space<vmem>>, %arg11: memref<1x1x1x32xf32, #tpu.memory_space<vmem>>, %arg12: memref<1x1x32x64xbf16, #tpu.memory_space<vmem>>, %arg13: memref<1x1x1x64xf32, #tpu.memory_space<vmem>>, %arg14: memref<1x1x64x32xbf16, #tpu.memory_space<vmem>>, %arg15: memref<1x1x1x32xf32, #tpu.memory_space<vmem>>, %arg16: memref<1x1x1x32xf32, #tpu.memory_space<vmem>>, %arg17: memref<1x1x1x32xf32, #tpu.memory_space<vmem>>, %arg18: memref<1x1x1x32xf32, #tpu.memory_space<vmem>>, %arg19: memref<1x1x1x32xf32, #tpu.memory_space<vmem>>, %arg20: memref<1x32xf32, #tpu.memory_space<vmem>>, %arg21: memref<1x32xf32, #tpu.memory_space<vmem>>, %arg22: memref<1x8x32xf32, #tpu.memory_space<vmem>>, %arg23: memref<8x32xf32, #tpu.memory_space<vmem>>, %arg24: memref<8x32xf32, #tpu.memory_space<vmem>>) attributes {dimension_semantics = [#tpu.dimension_semantics<parallel>, #tpu.dimension_semantics<arbitrary>, #tpu.dimension_semantics<arbitrary>], iteration_bounds = array<i64: 2, 2, 4>, scalar_prefetch = 0 : i64, scratch_operands = 2 : i64, tpu.core_type = #tpu.core_type<tc>, window_params = [{transform_indices = @transform_0, window_bounds = array<i64: 1, 8, 32>}, {transform_indices = @transform_1, window_bounds = array<i64: 1, 8, 1>}, {transform_indices = @transform_2, window_bounds = array<i64: 1, 1, 8>}, {transform_indices = @transform_3, window_bounds = array<i64: 1, 8, 1>}, {transform_indices = @transform_4, window_bounds = array<i64: 1, 1, 8>}, {transform_indices = @transform_5, window_bounds = array<i64: 1, 1, 32, 96>}, {transform_indices = @transform_6, window_bounds = array<i64: 1, 1, 1, 96>}, {transform_indices = @transform_7, window_bounds = array<i64: 1, 1, 32, 32>}, {transform_indices = @transform_8, window_bounds = array<i64: 1, 1, 1, 32>}, {transform_indices = @transform_9, window_bounds = array<i64: 1, 1, 32, 64>}, {transform_indices = @transform_10, window_bounds = array<i64: 1, 1, 1, 64>}, {transform_indices = @transform_11, window_bounds = array<i64: 1, 1, 64, 32>}, {transform_indices = @transform_12, window_bounds = array<i64: 1, 1, 1, 32>}, {transform_indices = @transform_13, window_bounds = array<i64: 1, 1, 1, 32>}, {transform_indices = @transform_14, window_bounds = array<i64: 1, 1, 1, 32>}, {transform_indices = @transform_15, window_bounds = array<i64: 1, 1, 1, 32>}, {transform_indices = @transform_16, window_bounds = array<i64: 1, 1, 1, 32>}, {pipeline_mode = #tpu.pipeline_mode<synchronous>, transform_indices = @transform_17, window_bounds = array<i64: 1, 32>}, {pipeline_mode = #tpu.pipeline_mode<synchronous>, transform_indices = @transform_18, window_bounds = array<i64: 1, 32>}, {transform_indices = @transform_19, window_bounds = array<i64: 1, 8, 32>}]} {
    %c0_i32 = arith.constant 0 : i32
    %0 = arith.cmpi eq, %arg1, %c0_i32 : i32
    %c0_i32_0 = arith.constant 0 : i32
    %1 = arith.cmpi eq, %arg2, %c0_i32_0 : i32
    %2 = arith.andi %0, %1 : i1
    %3 = arith.extui %2 : i1 to i32
    %c0_i32_1 = arith.constant 0 : i32
    %4 = arith.cmpi ne, %3, %c0_i32_1 : i32
    scf.if %4 {
      %c0_126 = arith.constant 0 : index
      %c0_127 = arith.constant 0 : index
      %c0_128 = arith.constant 0 : index
      %255 = vector.load %arg3[%c0_126, %c0_127, %c0_128] : memref<1x8x32xf32, #tpu.memory_space<vmem>>, vector<1x8x32xf32>
      %256 = vector.shape_cast %255 : vector<1x8x32xf32> to vector<8x32xf32>
      %c0_129 = arith.constant 0 : index
      %c0_130 = arith.constant 0 : index
      %257 = vector.load %arg23[%c0_129, %c0_130] : memref<8x32xf32, #tpu.memory_space<vmem>>, vector<8x32xf32>
      tpu.vector_store %arg23[%c0_129, %c0_130], %256 {strides = array<i32>} : memref<8x32xf32, #tpu.memory_space<vmem>>, vector<8x32xf32>,
    } else {
    }
    %c0_i32_2 = arith.constant 0 : i32
    %5 = arith.cmpi eq, %arg2, %c0_i32_2 : i32
    %6 = arith.extui %5 : i1 to i32
    %c0_i32_3 = arith.constant 0 : i32
    %7 = arith.cmpi ne, %6, %c0_i32_3 : i32
    scf.if %7 {
      %cst_126 = arith.constant 0.000000e+00 : f32
      %255 = vector.broadcast %cst_126 : f32 to vector<8x32xf32>
      %c0_127 = arith.constant 0 : index
      %c0_128 = arith.constant 0 : index
      %256 = vector.load %arg24[%c0_127, %c0_128] : memref<8x32xf32, #tpu.memory_space<vmem>>, vector<8x32xf32>
      tpu.vector_store %arg24[%c0_127, %c0_128], %255 {strides = array<i32>} : memref<8x32xf32, #tpu.memory_space<vmem>>, vector<8x32xf32>,
    } else {
    }
    %8 = tpu.iota {dimensions = array<i32: 0>} : vector<8x8xi32>
    %9 = tpu.iota {dimensions = array<i32: 1>} : vector<8x8xi32>
    %c0 = arith.constant 0 : index
    %c0_4 = arith.constant 0 : index
    %c0_5 = arith.constant 0 : index
    %10 = vector.load %arg4[%c0, %c0_4, %c0_5] : memref<1x8x1xf32, #tpu.memory_space<vmem>>, vector<1x8x1xf32>
    %11 = vector.shape_cast %10 : vector<1x8x1xf32> to vector<8x1xf32>
    %c0_6 = arith.constant 0 : index
    %c0_7 = arith.constant 0 : index
    %c0_8 = arith.constant 0 : index
    %12 = vector.load %arg5[%c0_6, %c0_7, %c0_8] : memref<1x1x8xf32, #tpu.memory_space<vmem>>, vector<1x1x8xf32>
    %13 = vector.shape_cast %12 : vector<1x1x8xf32> to vector<1x8xf32>
    %14 = vector.broadcast %11 : vector<8x1xf32> to vector<8x8xf32>
    %15 = vector.broadcast %13 : vector<1x8xf32> to vector<8x8xf32>
    %16 = arith.subf %14, %15 : vector<8x8xf32>
    %cst = arith.constant 0.000000e+00 : f32
    %17 = vector.broadcast %cst : f32 to vector<8x8xf32>
    %cst_9 = arith.constant 0.000000e+00 : f32
    %18 = vector.broadcast %cst_9 : f32 to vector<8x8xf32>
    %c0_i32_10 = arith.constant 0 : i32
    %19 = arith.cmpi eq, %arg2, %c0_i32_10 : i32
    %cst_11 = arith.constant 1.000000e+00 : f32
    %cst_12 = arith.constant 0.000000e+00 : f32
    %20 = arith.select %19, %cst_11, %cst_12 : f32
    %21 = vector.broadcast %20 : f32 to vector<8x8xf32>
    %22 = arith.mulf %21, %18 : vector<8x8xf32>
    %23 = arith.addf %17, %22 : vector<8x8xf32>
    %cst_13 = arith.constant 0.000000e+00 : f32
    %24 = vector.broadcast %cst_13 : f32 to vector<8x8xf32>
    %25 = arith.cmpf one, %16, %24 : vector<8x8xf32>
    %cst_14 = arith.constant 1.000000e+00 : f32
    %cst_15 = arith.constant 0.000000e+00 : f32
    %26 = vector.broadcast %cst_14 : f32 to vector<8x8xf32>
    %27 = vector.broadcast %cst_15 : f32 to vector<8x8xf32>
    %28 = arith.select %25, %26, %27 : vector<8x8xi1>, vector<8x8xf32>
    %c1_i32 = arith.constant 1 : i32
    %29 = arith.cmpi eq, %arg2, %c1_i32 : i32
    %cst_16 = arith.constant 1.000000e+00 : f32
    %cst_17 = arith.constant 0.000000e+00 : f32
    %30 = arith.select %29, %cst_16, %cst_17 : f32
    %31 = vector.broadcast %30 : f32 to vector<8x8xf32>
    %32 = arith.mulf %31, %28 : vector<8x8xf32>
    %33 = arith.addf %23, %32 : vector<8x8xf32>
    %cst_18 = arith.constant 0.000000e+00 : f32
    %34 = vector.broadcast %cst_18 : f32 to vector<8x8xf32>
    %35 = arith.cmpf oeq, %16, %34 : vector<8x8xf32>
    %36 = arith.cmpi ne, %8, %9 : vector<8x8xi32>
    %37 = arith.andi %35, %36 : vector<8x8xi1>
    %cst_19 = arith.constant 1.000000e+00 : f32
    %cst_20 = arith.constant 0.000000e+00 : f32
    %38 = vector.broadcast %cst_19 : f32 to vector<8x8xf32>
    %39 = vector.broadcast %cst_20 : f32 to vector<8x8xf32>
    %40 = arith.select %37, %38, %39 : vector<8x8xi1>, vector<8x8xf32>
    %c2_i32 = arith.constant 2 : i32
    %41 = arith.cmpi eq, %arg2, %c2_i32 : i32
    %cst_21 = arith.constant 1.000000e+00 : f32
    %cst_22 = arith.constant 0.000000e+00 : f32
    %42 = arith.select %41, %cst_21, %cst_22 : f32
    %43 = vector.broadcast %42 : f32 to vector<8x8xf32>
    %44 = arith.mulf %43, %40 : vector<8x8xf32>
    %45 = arith.addf %33, %44 : vector<8x8xf32>
    %46 = arith.subi %8, %9 : vector<8x8xi32>
    %47 = math.absi %46 : vector<8x8xi32>
    %c3_i32 = arith.constant 3 : i32
    %48 = vector.broadcast %c3_i32 : i32 to vector<8x8xi32>
    %49 = arith.cmpi sge, %47, %48 : vector<8x8xi32>
    %cst_23 = arith.constant 1.000000e+00 : f32
    %cst_24 = arith.constant 0.000000e+00 : f32
    %50 = vector.broadcast %cst_23 : f32 to vector<8x8xf32>
    %51 = vector.broadcast %cst_24 : f32 to vector<8x8xf32>
    %52 = arith.select %49, %50, %51 : vector<8x8xi1>, vector<8x8xf32>
    %c3_i32_25 = arith.constant 3 : i32
    %53 = arith.cmpi eq, %arg2, %c3_i32_25 : i32
    %cst_26 = arith.constant 1.000000e+00 : f32
    %cst_27 = arith.constant 0.000000e+00 : f32
    %54 = arith.select %53, %cst_26, %cst_27 : f32
    %55 = vector.broadcast %54 : f32 to vector<8x8xf32>
    %56 = arith.mulf %55, %52 : vector<8x8xf32>
    %57 = arith.addf %45, %56 : vector<8x8xf32>
    %c0_28 = arith.constant 0 : index
    %c0_29 = arith.constant 0 : index
    %c0_30 = arith.constant 0 : index
    %58 = vector.load %arg6[%c0_28, %c0_29, %c0_30] : memref<1x8x1xf32, #tpu.memory_space<vmem>>, vector<1x8x1xf32>
    %59 = vector.shape_cast %58 : vector<1x8x1xf32> to vector<8x1xf32>
    %c0_31 = arith.constant 0 : index
    %c0_32 = arith.constant 0 : index
    %c0_33 = arith.constant 0 : index
    %60 = vector.load %arg7[%c0_31, %c0_32, %c0_33] : memref<1x1x8xf32, #tpu.memory_space<vmem>>, vector<1x1x8xf32>
    %61 = vector.shape_cast %60 : vector<1x1x8xf32> to vector<1x8xf32>
    %62 = vector.broadcast %59 : vector<8x1xf32> to vector<8x8xf32>
    %63 = vector.broadcast %61 : vector<1x8xf32> to vector<8x8xf32>
    %64 = arith.mulf %62, %63 : vector<8x8xf32>
    %cst_34 = arith.constant 1.000000e+00 : f32
    %65 = vector.broadcast %cst_34 : f32 to vector<8x1xf32>
    %66 = arith.subf %65, %59 : vector<8x1xf32>
    %67 = vector.broadcast %61 : vector<1x8xf32> to vector<8x8xf32>
    %68 = arith.maximumf %57, %67 : vector<8x8xf32>
    %69 = vector.broadcast %66 : vector<8x1xf32> to vector<8x8xf32>
    %70 = arith.mulf %69, %68 : vector<8x8xf32>
    %71 = arith.addf %64, %70 : vector<8x8xf32>
    %cst_35 = arith.constant -1.000000e+09 : f32
    %72 = vector.broadcast %cst_35 : f32 to vector<8x8xf32>
    %73 = arith.mulf %71, %72 : vector<8x8xf32>
    %c0_36 = arith.constant 0 : index
    %c0_37 = arith.constant 0 : index
    %74 = vector.load %arg23[%c0_36, %c0_37] : memref<8x32xf32, #tpu.memory_space<vmem>>, vector<8x32xf32>
    %75 = arith.truncf %74 : vector<8x32xf32> to vector<8x32xbf16>
    %c0_38 = arith.constant 0 : index
    %c0_39 = arith.constant 0 : index
    %c0_40 = arith.constant 0 : index
    %c0_41 = arith.constant 0 : index
    %76 = vector.load %arg8[%c0_38, %c0_39, %c0_40, %c0_41] : memref<1x1x32x96xbf16, #tpu.memory_space<vmem>>, vector<1x1x32x96xbf16>
    %77 = vector.shape_cast %76 : vector<1x1x32x96xbf16> to vector<32x96xbf16>
    %cst_42 = arith.constant dense<0.000000e+00> : vector<8x96xf32>
    %78 = tpu.matmul %75, %77, %cst_42 {dimension_numbers = #tpu.dot_dimension_numbers<[1], [0], [0], [1], [0, 0, 1, 1], [], []>} : vector<8x32xbf16>, vector<32x96xbf16>, vector<8x96xf32> -> vector<8x96xf32>
    %c0_43 = arith.constant 0 : index
    %c0_44 = arith.constant 0 : index
    %c0_45 = arith.constant 0 : index
    %c0_46 = arith.constant 0 : index
    %79 = vector.load %arg9[%c0_43, %c0_44, %c0_45, %c0_46] : memref<1x1x1x96xf32, #tpu.memory_space<vmem>>, vector<1x1x1x96xf32>
    %80 = vector.shape_cast %79 : vector<1x1x1x96xf32> to vector<1x96xf32>
    %81 = vector.broadcast %80 : vector<1x96xf32> to vector<8x96xf32>
    %82 = arith.addf %78, %81 : vector<8x96xf32>
    %83 = vector.extract_strided_slice %82 {offsets = [0, 0], sizes = [8, 8], strides = [1, 1]} : vector<8x96xf32> to vector<8x8xf32>
    %84 = arith.truncf %83 : vector<8x8xf32> to vector<8x8xbf16>
    %85 = vector.extract_strided_slice %82 {offsets = [0, 32], sizes = [8, 8], strides = [1, 1]} : vector<8x96xf32> to vector<8x8xf32>
    %86 = arith.truncf %85 : vector<8x8xf32> to vector<8x8xbf16>
    %87 = vector.extract_strided_slice %82 {offsets = [0, 64], sizes = [8, 8], strides = [1, 1]} : vector<8x96xf32> to vector<8x8xf32>
    %88 = arith.truncf %87 : vector<8x8xf32> to vector<8x8xbf16>
    %cst_47 = arith.constant dense<0.000000e+00> : vector<8x8xf32>
    %89 = tpu.matmul %84, %86, %cst_47 {dimension_numbers = #tpu.dot_dimension_numbers<[1], [1], [0], [0], [0, 0, 1, 0], [], []>} : vector<8x8xbf16>, vector<8x8xbf16>, vector<8x8xf32> -> vector<8x8xf32>
    %90 = arith.addf %89, %73 : vector<8x8xf32>
    %cst_48 = arith.constant dense<0xFF800000> : vector<8xf32>
    %91 = vector.multi_reduction <maximumf>, %90, %cst_48 [1] : vector<8x8xf32> to vector<8xf32>
    %92 = vector.shape_cast %91 : vector<8xf32> to vector<8x1xf32>
    %93 = vector.broadcast %92 : vector<8x1xf32> to vector<8x8xf32>
    %94 = arith.subf %90, %93 : vector<8x8xf32>
    %95 = math.exp %94 : vector<8x8xf32>
    %cst_49 = arith.constant dense<0.000000e+00> : vector<8xf32>
    %96 = vector.multi_reduction <add>, %95, %cst_49 [1] : vector<8x8xf32> to vector<8xf32>
    %97 = vector.shape_cast %96 : vector<8xf32> to vector<8x1xf32>
    %98 = tpu.reciprocal %97 {approx = true} : vector<8x1xf32> -> vector<8x1xf32>
    %99 = vector.broadcast %98 : vector<8x1xf32> to vector<8x8xf32>
    %100 = arith.mulf %95, %99 : vector<8x8xf32>
    %101 = arith.truncf %100 : vector<8x8xf32> to vector<8x8xbf16>
    %cst_50 = arith.constant dense<0.000000e+00> : vector<8x8xf32>
    %102 = tpu.matmul %101, %88, %cst_50 {dimension_numbers = #tpu.dot_dimension_numbers<[1], [0], [0], [1], [0, 0, 1, 1], [], []>} : vector<8x8xbf16>, vector<8x8xbf16>, vector<8x8xf32> -> vector<8x8xf32>
    %103 = vector.extract_strided_slice %82 {offsets = [0, 8], sizes = [8, 8], strides = [1, 1]} : vector<8x96xf32> to vector<8x8xf32>
    %104 = arith.truncf %103 : vector<8x8xf32> to vector<8x8xbf16>
    %105 = vector.extract_strided_slice %82 {offsets = [0, 40], sizes = [8, 8], strides = [1, 1]} : vector<8x96xf32> to vector<8x8xf32>
    %106 = arith.truncf %105 : vector<8x8xf32> to vector<8x8xbf16>
    %107 = vector.extract_strided_slice %82 {offsets = [0, 72], sizes = [8, 8], strides = [1, 1]} : vector<8x96xf32> to vector<8x8xf32>
    %108 = arith.truncf %107 : vector<8x8xf32> to vector<8x8xbf16>
    %cst_51 = arith.constant dense<0.000000e+00> : vector<8x8xf32>
    %109 = tpu.matmul %104, %106, %cst_51 {dimension_numbers = #tpu.dot_dimension_numbers<[1], [1], [0], [0], [0, 0, 1, 0], [], []>} : vector<8x8xbf16>, vector<8x8xbf16>, vector<8x8xf32> -> vector<8x8xf32>
    %110 = arith.addf %109, %73 : vector<8x8xf32>
    %cst_52 = arith.constant dense<0xFF800000> : vector<8xf32>
    %111 = vector.multi_reduction <maximumf>, %110, %cst_52 [1] : vector<8x8xf32> to vector<8xf32>
    %112 = vector.shape_cast %111 : vector<8xf32> to vector<8x1xf32>
    %113 = vector.broadcast %112 : vector<8x1xf32> to vector<8x8xf32>
    %114 = arith.subf %110, %113 : vector<8x8xf32>
    %115 = math.exp %114 : vector<8x8xf32>
    %cst_53 = arith.constant dense<0.000000e+00> : vector<8xf32>
    %116 = vector.multi_reduction <add>, %115, %cst_53 [1] : vector<8x8xf32> to vector<8xf32>
    %117 = vector.shape_cast %116 : vector<8xf32> to vector<8x1xf32>
    %118 = tpu.reciprocal %117 {approx = true} : vector<8x1xf32> -> vector<8x1xf32>
    %119 = vector.broadcast %118 : vector<8x1xf32> to vector<8x8xf32>
    %120 = arith.mulf %115, %119 : vector<8x8xf32>
    %121 = arith.truncf %120 : vector<8x8xf32> to vector<8x8xbf16>
    %cst_54 = arith.constant dense<0.000000e+00> : vector<8x8xf32>
    %122 = tpu.matmul %121, %108, %cst_54 {dimension_numbers = #tpu.dot_dimension_numbers<[1], [0], [0], [1], [0, 0, 1, 1], [], []>} : vector<8x8xbf16>, vector<8x8xbf16>, vector<8x8xf32> -> vector<8x8xf32>
    %123 = vector.extract_strided_slice %82 {offsets = [0, 16], sizes = [8, 8], strides = [1, 1]} : vector<8x96xf32> to vector<8x8xf32>
    %124 = arith.truncf %123 : vector<8x8xf32> to vector<8x8xbf16>
    %125 = vector.extract_strided_slice %82 {offsets = [0, 48], sizes = [8, 8], strides = [1, 1]} : vector<8x96xf32> to vector<8x8xf32>
    %126 = arith.truncf %125 : vector<8x8xf32> to vector<8x8xbf16>
    %127 = vector.extract_strided_slice %82 {offsets = [0, 80], sizes = [8, 8], strides = [1, 1]} : vector<8x96xf32> to vector<8x8xf32>
    %128 = arith.truncf %127 : vector<8x8xf32> to vector<8x8xbf16>
    %cst_55 = arith.constant dense<0.000000e+00> : vector<8x8xf32>
    %129 = tpu.matmul %124, %126, %cst_55 {dimension_numbers = #tpu.dot_dimension_numbers<[1], [1], [0], [0], [0, 0, 1, 0], [], []>} : vector<8x8xbf16>, vector<8x8xbf16>, vector<8x8xf32> -> vector<8x8xf32>
    %130 = arith.addf %129, %73 : vector<8x8xf32>
    %cst_56 = arith.constant dense<0xFF800000> : vector<8xf32>
    %131 = vector.multi_reduction <maximumf>, %130, %cst_56 [1] : vector<8x8xf32> to vector<8xf32>
    %132 = vector.shape_cast %131 : vector<8xf32> to vector<8x1xf32>
    %133 = vector.broadcast %132 : vector<8x1xf32> to vector<8x8xf32>
    %134 = arith.subf %130, %133 : vector<8x8xf32>
    %135 = math.exp %134 : vector<8x8xf32>
    %cst_57 = arith.constant dense<0.000000e+00> : vector<8xf32>
    %136 = vector.multi_reduction <add>, %135, %cst_57 [1] : vector<8x8xf32> to vector<8xf32>
    %137 = vector.shape_cast %136 : vector<8xf32> to vector<8x1xf32>
    %138 = tpu.reciprocal %137 {approx = true} : vector<8x1xf32> -> vector<8x1xf32>
    %139 = vector.broadcast %138 : vector<8x1xf32> to vector<8x8xf32>
    %140 = arith.mulf %135, %139 : vector<8x8xf32>
    %141 = arith.truncf %140 : vector<8x8xf32> to vector<8x8xbf16>
    %cst_58 = arith.constant dense<0.000000e+00> : vector<8x8xf32>
    %142 = tpu.matmul %141, %128, %cst_58 {dimension_numbers = #tpu.dot_dimension_numbers<[1], [0], [0], [1], [0, 0, 1, 1], [], []>} : vector<8x8xbf16>, vector<8x8xbf16>, vector<8x8xf32> -> vector<8x8xf32>
    %143 = vector.extract_strided_slice %82 {offsets = [0, 24], sizes = [8, 8], strides = [1, 1]} : vector<8x96xf32> to vector<8x8xf32>
    %144 = arith.truncf %143 : vector<8x8xf32> to vector<8x8xbf16>
    %145 = vector.extract_strided_slice %82 {offsets = [0, 56], sizes = [8, 8], strides = [1, 1]} : vector<8x96xf32> to vector<8x8xf32>
    %146 = arith.truncf %145 : vector<8x8xf32> to vector<8x8xbf16>
    %147 = vector.extract_strided_slice %82 {offsets = [0, 88], sizes = [8, 8], strides = [1, 1]} : vector<8x96xf32> to vector<8x8xf32>
    %148 = arith.truncf %147 : vector<8x8xf32> to vector<8x8xbf16>
    %cst_59 = arith.constant dense<0.000000e+00> : vector<8x8xf32>
    %149 = tpu.matmul %144, %146, %cst_59 {dimension_numbers = #tpu.dot_dimension_numbers<[1], [1], [0], [0], [0, 0, 1, 0], [], []>} : vector<8x8xbf16>, vector<8x8xbf16>, vector<8x8xf32> -> vector<8x8xf32>
    %150 = arith.addf %149, %73 : vector<8x8xf32>
    %cst_60 = arith.constant dense<0xFF800000> : vector<8xf32>
    %151 = vector.multi_reduction <maximumf>, %150, %cst_60 [1] : vector<8x8xf32> to vector<8xf32>
    %152 = vector.shape_cast %151 : vector<8xf32> to vector<8x1xf32>
    %153 = vector.broadcast %152 : vector<8x1xf32> to vector<8x8xf32>
    %154 = arith.subf %150, %153 : vector<8x8xf32>
    %155 = math.exp %154 : vector<8x8xf32>
    %cst_61 = arith.constant dense<0.000000e+00> : vector<8xf32>
    %156 = vector.multi_reduction <add>, %155, %cst_61 [1] : vector<8x8xf32> to vector<8xf32>
    %157 = vector.shape_cast %156 : vector<8xf32> to vector<8x1xf32>
    %158 = tpu.reciprocal %157 {approx = true} : vector<8x1xf32> -> vector<8x1xf32>
    %159 = vector.broadcast %158 : vector<8x1xf32> to vector<8x8xf32>
    %160 = arith.mulf %155, %159 : vector<8x8xf32>
    %161 = arith.truncf %160 : vector<8x8xf32> to vector<8x8xbf16>
    %cst_62 = arith.constant dense<0.000000e+00> : vector<8x8xf32>
    %162 = tpu.matmul %161, %148, %cst_62 {dimension_numbers = #tpu.dot_dimension_numbers<[1], [0], [0], [1], [0, 0, 1, 1], [], []>} : vector<8x8xbf16>, vector<8x8xbf16>, vector<8x8xf32> -> vector<8x8xf32>
    %163 = tpu.concatenate %102, %122, %142, %162 in 1 : vector<8x8xf32>, vector<8x8xf32>, vector<8x8xf32>, vector<8x8xf32> -> vector<8x32xf32>
    %164 = arith.truncf %163 : vector<8x32xf32> to vector<8x32xbf16>
    %c0_63 = arith.constant 0 : index
    %c0_64 = arith.constant 0 : index
    %c0_65 = arith.constant 0 : index
    %c0_66 = arith.constant 0 : index
    %165 = vector.load %arg10[%c0_63, %c0_64, %c0_65, %c0_66] : memref<1x1x32x32xbf16, #tpu.memory_space<vmem>>, vector<1x1x32x32xbf16>
    %166 = vector.shape_cast %165 : vector<1x1x32x32xbf16> to vector<32x32xbf16>
    %cst_67 = arith.constant dense<0.000000e+00> : vector<8x32xf32>
    %167 = tpu.matmul %164, %166, %cst_67 {dimension_numbers = #tpu.dot_dimension_numbers<[1], [0], [0], [1], [0, 0, 1, 1], [], []>} : vector<8x32xbf16>, vector<32x32xbf16>, vector<8x32xf32> -> vector<8x32xf32>
    %c0_68 = arith.constant 0 : index
    %c0_69 = arith.constant 0 : index
    %c0_70 = arith.constant 0 : index
    %c0_71 = arith.constant 0 : index
    %168 = vector.load %arg11[%c0_68, %c0_69, %c0_70, %c0_71] : memref<1x1x1x32xf32, #tpu.memory_space<vmem>>, vector<1x1x1x32xf32>
    %169 = vector.shape_cast %168 : vector<1x1x1x32xf32> to vector<1x32xf32>
    %170 = vector.broadcast %169 : vector<1x32xf32> to vector<8x32xf32>
    %171 = arith.addf %167, %170 : vector<8x32xf32>
    %172 = arith.addf %74, %171 : vector<8x32xf32>
    %c0_72 = arith.constant 0 : index
    %c0_73 = arith.constant 0 : index
    %c0_74 = arith.constant 0 : index
    %c0_75 = arith.constant 0 : index
    %173 = vector.load %arg16[%c0_72, %c0_73, %c0_74, %c0_75] : memref<1x1x1x32xf32, #tpu.memory_space<vmem>>, vector<1x1x1x32xf32>
    %174 = vector.shape_cast %173 : vector<1x1x1x32xf32> to vector<1x32xf32>
    %c0_76 = arith.constant 0 : index
    %c0_77 = arith.constant 0 : index
    %c0_78 = arith.constant 0 : index
    %c0_79 = arith.constant 0 : index
    %175 = vector.load %arg17[%c0_76, %c0_77, %c0_78, %c0_79] : memref<1x1x1x32xf32, #tpu.memory_space<vmem>>, vector<1x1x1x32xf32>
    %176 = vector.shape_cast %175 : vector<1x1x1x32xf32> to vector<1x32xf32>
    %cst_80 = arith.constant dense<0.000000e+00> : vector<8xf32>
    %177 = vector.multi_reduction <add>, %172, %cst_80 [1] : vector<8x32xf32> to vector<8xf32>
    %178 = vector.shape_cast %177 : vector<8xf32> to vector<8x1xf32>
    %cst_81 = arith.constant 3.200000e+01 : f32
    %179 = vector.broadcast %cst_81 : f32 to vector<8x1xf32>
    %180 = arith.divf %178, %179 : vector<8x1xf32>
    %181 = vector.broadcast %180 : vector<8x1xf32> to vector<8x32xf32>
    %182 = arith.subf %172, %181 : vector<8x32xf32>
    %183 = arith.mulf %182, %182 : vector<8x32xf32>
    %cst_82 = arith.constant dense<0.000000e+00> : vector<8xf32>
    %184 = vector.multi_reduction <add>, %183, %cst_82 [1] : vector<8x32xf32> to vector<8xf32>
    %185 = vector.shape_cast %184 : vector<8xf32> to vector<8x1xf32>
    %cst_83 = arith.constant 3.200000e+01 : f32
    %186 = vector.broadcast %cst_83 : f32 to vector<8x1xf32>
    %187 = arith.divf %185, %186 : vector<8x1xf32>
    %188 = vector.broadcast %180 : vector<8x1xf32> to vector<8x32xf32>
    %189 = arith.subf %172, %188 : vector<8x32xf32>
    %cst_84 = arith.constant 9.99999974E-6 : f32
    %190 = vector.broadcast %cst_84 : f32 to vector<8x1xf32>
    %191 = arith.addf %187, %190 : vector<8x1xf32>
    %192 = math.rsqrt %191 : vector<8x1xf32>
    %193 = vector.broadcast %192 : vector<8x1xf32> to vector<8x32xf32>
    %194 = arith.mulf %189, %193 : vector<8x32xf32>
    %195 = vector.broadcast %174 : vector<1x32xf32> to vector<8x32xf32>
    %196 = arith.mulf %194, %195 : vector<8x32xf32>
    %197 = vector.broadcast %176 : vector<1x32xf32> to vector<8x32xf32>
    %198 = arith.addf %196, %197 : vector<8x32xf32>
    %199 = arith.truncf %198 : vector<8x32xf32> to vector<8x32xbf16>
    %c0_85 = arith.constant 0 : index
    %c0_86 = arith.constant 0 : index
    %c0_87 = arith.constant 0 : index
    %c0_88 = arith.constant 0 : index
    %200 = vector.load %arg12[%c0_85, %c0_86, %c0_87, %c0_88] : memref<1x1x32x64xbf16, #tpu.memory_space<vmem>>, vector<1x1x32x64xbf16>
    %201 = vector.shape_cast %200 : vector<1x1x32x64xbf16> to vector<32x64xbf16>
    %cst_89 = arith.constant dense<0.000000e+00> : vector<8x64xf32>
    %202 = tpu.matmul %199, %201, %cst_89 {dimension_numbers = #tpu.dot_dimension_numbers<[1], [0], [0], [1], [0, 0, 1, 1], [], []>} : vector<8x32xbf16>, vector<32x64xbf16>, vector<8x64xf32> -> vector<8x64xf32>
    %c0_90 = arith.constant 0 : index
    %c0_91 = arith.constant 0 : index
    %c0_92 = arith.constant 0 : index
    %c0_93 = arith.constant 0 : index
    %203 = vector.load %arg13[%c0_90, %c0_91, %c0_92, %c0_93] : memref<1x1x1x64xf32, #tpu.memory_space<vmem>>, vector<1x1x1x64xf32>
    %204 = vector.shape_cast %203 : vector<1x1x1x64xf32> to vector<1x64xf32>
    %205 = vector.broadcast %204 : vector<1x64xf32> to vector<8x64xf32>
    %206 = arith.addf %202, %205 : vector<8x64xf32>
    %cst_94 = arith.constant 0.000000e+00 : f32
    %207 = vector.broadcast %cst_94 : f32 to vector<8x64xf32>
    %208 = arith.maximumf %206, %207 : vector<8x64xf32>
    %209 = arith.truncf %208 : vector<8x64xf32> to vector<8x64xbf16>
    %c0_95 = arith.constant 0 : index
    %c0_96 = arith.constant 0 : index
    %c0_97 = arith.constant 0 : index
    %c0_98 = arith.constant 0 : index
    %210 = vector.load %arg14[%c0_95, %c0_96, %c0_97, %c0_98] : memref<1x1x64x32xbf16, #tpu.memory_space<vmem>>, vector<1x1x64x32xbf16>
    %211 = vector.shape_cast %210 : vector<1x1x64x32xbf16> to vector<64x32xbf16>
    %cst_99 = arith.constant dense<0.000000e+00> : vector<8x32xf32>
    %212 = tpu.matmul %209, %211, %cst_99 {dimension_numbers = #tpu.dot_dimension_numbers<[1], [0], [0], [1], [0, 0, 1, 1], [], []>} : vector<8x64xbf16>, vector<64x32xbf16>, vector<8x32xf32> -> vector<8x32xf32>
    %c0_100 = arith.constant 0 : index
    %c0_101 = arith.constant 0 : index
    %c0_102 = arith.constant 0 : index
    %c0_103 = arith.constant 0 : index
    %213 = vector.load %arg15[%c0_100, %c0_101, %c0_102, %c0_103] : memref<1x1x1x32xf32, #tpu.memory_space<vmem>>, vector<1x1x1x32xf32>
    %214 = vector.shape_cast %213 : vector<1x1x1x32xf32> to vector<1x32xf32>
    %215 = vector.broadcast %214 : vector<1x32xf32> to vector<8x32xf32>
    %216 = arith.addf %212, %215 : vector<8x32xf32>
    %217 = arith.addf %198, %216 : vector<8x32xf32>
    %c0_104 = arith.constant 0 : index
    %c0_105 = arith.constant 0 : index
    %c0_106 = arith.constant 0 : index
    %c0_107 = arith.constant 0 : index
    %218 = vector.load %arg18[%c0_104, %c0_105, %c0_106, %c0_107] : memref<1x1x1x32xf32, #tpu.memory_space<vmem>>, vector<1x1x1x32xf32>
    %219 = vector.shape_cast %218 : vector<1x1x1x32xf32> to vector<1x32xf32>
    %c0_108 = arith.constant 0 : index
    %c0_109 = arith.constant 0 : index
    %c0_110 = arith.constant 0 : index
    %c0_111 = arith.constant 0 : index
    %220 = vector.load %arg19[%c0_108, %c0_109, %c0_110, %c0_111] : memref<1x1x1x32xf32, #tpu.memory_space<vmem>>, vector<1x1x1x32xf32>
    %221 = vector.shape_cast %220 : vector<1x1x1x32xf32> to vector<1x32xf32>
    %cst_112 = arith.constant dense<0.000000e+00> : vector<8xf32>
    %222 = vector.multi_reduction <add>, %217, %cst_112 [1] : vector<8x32xf32> to vector<8xf32>
    %223 = vector.shape_cast %222 : vector<8xf32> to vector<8x1xf32>
    %cst_113 = arith.constant 3.200000e+01 : f32
    %224 = vector.broadcast %cst_113 : f32 to vector<8x1xf32>
    %225 = arith.divf %223, %224 : vector<8x1xf32>
    %226 = vector.broadcast %225 : vector<8x1xf32> to vector<8x32xf32>
    %227 = arith.subf %217, %226 : vector<8x32xf32>
    %228 = arith.mulf %227, %227 : vector<8x32xf32>
    %cst_114 = arith.constant dense<0.000000e+00> : vector<8xf32>
    %229 = vector.multi_reduction <add>, %228, %cst_114 [1] : vector<8x32xf32> to vector<8xf32>
    %230 = vector.shape_cast %229 : vector<8xf32> to vector<8x1xf32>
    %cst_115 = arith.constant 3.200000e+01 : f32
    %231 = vector.broadcast %cst_115 : f32 to vector<8x1xf32>
    %232 = arith.divf %230, %231 : vector<8x1xf32>
    %233 = vector.broadcast %225 : vector<8x1xf32> to vector<8x32xf32>
    %234 = arith.subf %217, %233 : vector<8x32xf32>
    %cst_116 = arith.constant 9.99999974E-6 : f32
    %235 = vector.broadcast %cst_116 : f32 to vector<8x1xf32>
    %236 = arith.addf %232, %235 : vector<8x1xf32>
    %237 = math.rsqrt %236 : vector<8x1xf32>
    %238 = vector.broadcast %237 : vector<8x1xf32> to vector<8x32xf32>
    %239 = arith.mulf %234, %238 : vector<8x32xf32>
    %240 = vector.broadcast %219 : vector<1x32xf32> to vector<8x32xf32>
    %241 = arith.mulf %239, %240 : vector<8x32xf32>
    %242 = vector.broadcast %221 : vector<1x32xf32> to vector<8x32xf32>
    %243 = arith.addf %241, %242 : vector<8x32xf32>
    %c0_117 = arith.constant 0 : index
    %c0_118 = arith.constant 0 : index
    %244 = vector.load %arg24[%c0_117, %c0_118] : memref<8x32xf32, #tpu.memory_space<vmem>>, vector<8x32xf32>
    %245 = arith.addf %244, %243 : vector<8x32xf32>
    %c0_119 = arith.constant 0 : index
    %c0_120 = arith.constant 0 : index
    %246 = vector.load %arg24[%c0_119, %c0_120] : memref<8x32xf32, #tpu.memory_space<vmem>>, vector<8x32xf32>
    tpu.vector_store %arg24[%c0_119, %c0_120], %245 {strides = array<i32>} : memref<8x32xf32, #tpu.memory_space<vmem>>, vector<8x32xf32>,
    %c3_i32_121 = arith.constant 3 : i32
    %247 = arith.cmpi eq, %arg2, %c3_i32_121 : i32
    %248 = arith.extui %247 : i1 to i32
    %c0_i32_122 = arith.constant 0 : i32
    %249 = arith.cmpi ne, %248, %c0_i32_122 : i32
    scf.if %249 {
      %c0_126 = arith.constant 0 : index
      %c0_127 = arith.constant 0 : index
      %255 = vector.load %arg24[%c0_126, %c0_127] : memref<8x32xf32, #tpu.memory_space<vmem>>, vector<8x32xf32>
      %c0_128 = arith.constant 0 : index
      %c0_129 = arith.constant 0 : index
      %256 = vector.load %arg23[%c0_128, %c0_129] : memref<8x32xf32, #tpu.memory_space<vmem>>, vector<8x32xf32>
      tpu.vector_store %arg23[%c0_128, %c0_129], %255 {strides = array<i32>} : memref<8x32xf32, #tpu.memory_space<vmem>>, vector<8x32xf32>,
    } else {
    }
    %c1_i32_123 = arith.constant 1 : i32
    %250 = arith.cmpi eq, %arg1, %c1_i32_123 : i32
    %c3_i32_124 = arith.constant 3 : i32
    %251 = arith.cmpi eq, %arg2, %c3_i32_124 : i32
    %252 = arith.andi %250, %251 : i1
    %253 = arith.extui %252 : i1 to i32
    %c0_i32_125 = arith.constant 0 : i32
    %254 = arith.cmpi ne, %253, %c0_i32_125 : i32
    scf.if %254 {
      %c0_126 = arith.constant 0 : index
      %c0_127 = arith.constant 0 : index
      %255 = vector.load %arg24[%c0_126, %c0_127] : memref<8x32xf32, #tpu.memory_space<vmem>>, vector<8x32xf32>
      %c0_128 = arith.constant 0 : index
      %c0_129 = arith.constant 0 : index
      %256 = vector.load %arg20[%c0_128, %c0_129] : memref<1x32xf32, #tpu.memory_space<vmem>>, vector<1x32xf32>
      %c0_130 = arith.constant 0 : index
      %c0_131 = arith.constant 0 : index
      %257 = vector.load %arg21[%c0_130, %c0_131] : memref<1x32xf32, #tpu.memory_space<vmem>>, vector<1x32xf32>
      %cst_132 = arith.constant dense<0.000000e+00> : vector<8xf32>
      %258 = vector.multi_reduction <add>, %255, %cst_132 [1] : vector<8x32xf32> to vector<8xf32>
      %259 = vector.shape_cast %258 : vector<8xf32> to vector<8x1xf32>
      %cst_133 = arith.constant 3.200000e+01 : f32
      %260 = vector.broadcast %cst_133 : f32 to vector<8x1xf32>
      %261 = arith.divf %259, %260 : vector<8x1xf32>
      %262 = vector.broadcast %261 : vector<8x1xf32> to vector<8x32xf32>
      %263 = arith.subf %255, %262 : vector<8x32xf32>
      %264 = arith.mulf %263, %263 : vector<8x32xf32>
      %cst_134 = arith.constant dense<0.000000e+00> : vector<8xf32>
      %265 = vector.multi_reduction <add>, %264, %cst_134 [1] : vector<8x32xf32> to vector<8xf32>
      %266 = vector.shape_cast %265 : vector<8xf32> to vector<8x1xf32>
      %cst_135 = arith.constant 3.200000e+01 : f32
      %267 = vector.broadcast %cst_135 : f32 to vector<8x1xf32>
      %268 = arith.divf %266, %267 : vector<8x1xf32>
      %269 = vector.broadcast %261 : vector<8x1xf32> to vector<8x32xf32>
      %270 = arith.subf %255, %269 : vector<8x32xf32>
      %cst_136 = arith.constant 9.99999974E-6 : f32
      %271 = vector.broadcast %cst_136 : f32 to vector<8x1xf32>
      %272 = arith.addf %268, %271 : vector<8x1xf32>
      %273 = math.rsqrt %272 : vector<8x1xf32>
      %274 = vector.broadcast %273 : vector<8x1xf32> to vector<8x32xf32>
      %275 = arith.mulf %270, %274 : vector<8x32xf32>
      %276 = vector.broadcast %256 : vector<1x32xf32> to vector<8x32xf32>
      %277 = arith.mulf %275, %276 : vector<8x32xf32>
      %278 = vector.broadcast %257 : vector<1x32xf32> to vector<8x32xf32>
      %279 = arith.addf %277, %278 : vector<8x32xf32>
      %c0_137 = arith.constant 0 : index
      %c0_138 = arith.constant 0 : index
      %c0_139 = arith.constant 0 : index
      %280 = vector.load %arg22[%c0_137, %c0_138, %c0_139] : memref<1x8x32xf32, #tpu.memory_space<vmem>>, vector<1x8x32xf32>
      %281 = vector.shape_cast %280 : vector<1x8x32xf32> to vector<8x32xf32>
      %282 = vector.shape_cast %279 : vector<8x32xf32> to vector<1x8x32xf32>
      tpu.vector_store %arg22[%c0_137, %c0_138, %c0_139], %282 {strides = array<i32>} : memref<1x8x32xf32, #tpu.memory_space<vmem>>, vector<1x8x32xf32>,
    } else {
    }
    return
  }
  func.func @transform_0(%arg0: i32, %arg1: i32, %arg2: i32) -> (i32, i32, i32) {
    %c0_i32 = arith.constant 0 : i32
    %c0_i32_0 = arith.constant 0 : i32
    %c0_i32_1 = arith.constant 0 : i32
    return %arg0, %c0_i32, %c0_i32_0 : i32, i32, i32
  }
  func.func @transform_1(%arg0: i32, %arg1: i32, %arg2: i32) -> (i32, i32, i32) {
    %c0_i32 = arith.constant 0 : i32
    %c0_i32_0 = arith.constant 0 : i32
    %c0_i32_1 = arith.constant 0 : i32
    return %arg0, %c0_i32, %c0_i32_0 : i32, i32, i32
  }
  func.func @transform_2(%arg0: i32, %arg1: i32, %arg2: i32) -> (i32, i32, i32) {
    %c0_i32 = arith.constant 0 : i32
    %c0_i32_0 = arith.constant 0 : i32
    %c0_i32_1 = arith.constant 0 : i32
    return %arg0, %c0_i32, %c0_i32_0 : i32, i32, i32
  }
  func.func @transform_3(%arg0: i32, %arg1: i32, %arg2: i32) -> (i32, i32, i32) {
    %c0_i32 = arith.constant 0 : i32
    %c0_i32_0 = arith.constant 0 : i32
    %c0_i32_1 = arith.constant 0 : i32
    return %arg0, %c0_i32, %c0_i32_0 : i32, i32, i32
  }
  func.func @transform_4(%arg0: i32, %arg1: i32, %arg2: i32) -> (i32, i32, i32) {
    %c0_i32 = arith.constant 0 : i32
    %c0_i32_0 = arith.constant 0 : i32
    %c0_i32_1 = arith.constant 0 : i32
    return %arg0, %c0_i32, %c0_i32_0 : i32, i32, i32
  }
  func.func @transform_5(%arg0: i32, %arg1: i32, %arg2: i32) -> (i32, i32, i32, i32) {
    %c0_i32 = arith.constant 0 : i32
    %c0_i32_0 = arith.constant 0 : i32
    %c0_i32_1 = arith.constant 0 : i32
    return %arg1, %arg2, %c0_i32, %c0_i32_0 : i32, i32, i32, i32
  }
  func.func @transform_6(%arg0: i32, %arg1: i32, %arg2: i32) -> (i32, i32, i32, i32) {
    %c0_i32 = arith.constant 0 : i32
    %c0_i32_0 = arith.constant 0 : i32
    %c0_i32_1 = arith.constant 0 : i32
    return %arg1, %arg2, %c0_i32, %c0_i32_0 : i32, i32, i32, i32
  }
  func.func @transform_7(%arg0: i32, %arg1: i32, %arg2: i32) -> (i32, i32, i32, i32) {
    %c0_i32 = arith.constant 0 : i32
    %c0_i32_0 = arith.constant 0 : i32
    %c0_i32_1 = arith.constant 0 : i32
    return %arg1, %arg2, %c0_i32, %c0_i32_0 : i32, i32, i32, i32
  }
  func.func @transform_8(%arg0: i32, %arg1: i32, %arg2: i32) -> (i32, i32, i32, i32) {
    %c0_i32 = arith.constant 0 : i32
    %c0_i32_0 = arith.constant 0 : i32
    %c0_i32_1 = arith.constant 0 : i32
    return %arg1, %arg2, %c0_i32, %c0_i32_0 : i32, i32, i32, i32
  }
  func.func @transform_9(%arg0: i32, %arg1: i32, %arg2: i32) -> (i32, i32, i32, i32) {
    %c0_i32 = arith.constant 0 : i32
    %c0_i32_0 = arith.constant 0 : i32
    %c0_i32_1 = arith.constant 0 : i32
    return %arg1, %arg2, %c0_i32, %c0_i32_0 : i32, i32, i32, i32
  }
  func.func @transform_10(%arg0: i32, %arg1: i32, %arg2: i32) -> (i32, i32, i32, i32) {
    %c0_i32 = arith.constant 0 : i32
    %c0_i32_0 = arith.constant 0 : i32
    %c0_i32_1 = arith.constant 0 : i32
    return %arg1, %arg2, %c0_i32, %c0_i32_0 : i32, i32, i32, i32
  }
  func.func @transform_11(%arg0: i32, %arg1: i32, %arg2: i32) -> (i32, i32, i32, i32) {
    %c0_i32 = arith.constant 0 : i32
    %c0_i32_0 = arith.constant 0 : i32
    %c0_i32_1 = arith.constant 0 : i32
    return %arg1, %arg2, %c0_i32, %c0_i32_0 : i32, i32, i32, i32
  }
  func.func @transform_12(%arg0: i32, %arg1: i32, %arg2: i32) -> (i32, i32, i32, i32) {
    %c0_i32 = arith.constant 0 : i32
    %c0_i32_0 = arith.constant 0 : i32
    %c0_i32_1 = arith.constant 0 : i32
    return %arg1, %arg2, %c0_i32, %c0_i32_0 : i32, i32, i32, i32
  }
  func.func @transform_13(%arg0: i32, %arg1: i32, %arg2: i32) -> (i32, i32, i32, i32) {
    %c0_i32 = arith.constant 0 : i32
    %c0_i32_0 = arith.constant 0 : i32
    %c0_i32_1 = arith.constant 0 : i32
    return %arg1, %arg2, %c0_i32, %c0_i32_0 : i32, i32, i32, i32
  }
  func.func @transform_14(%arg0: i32, %arg1: i32, %arg2: i32) -> (i32, i32, i32, i32) {
    %c0_i32 = arith.constant 0 : i32
    %c0_i32_0 = arith.constant 0 : i32
    %c0_i32_1 = arith.constant 0 : i32
    return %arg1, %arg2, %c0_i32, %c0_i32_0 : i32, i32, i32, i32
  }
  func.func @transform_15(%arg0: i32, %arg1: i32, %arg2: i32) -> (i32, i32, i32, i32) {
    %c0_i32 = arith.constant 0 : i32
    %c0_i32_0 = arith.constant 0 : i32
    %c0_i32_1 = arith.constant 0 : i32
    return %arg1, %arg2, %c0_i32, %c0_i32_0 : i32, i32, i32, i32
  }
  func.func @transform_16(%arg0: i32, %arg1: i32, %arg2: i32) -> (i32, i32, i32, i32) {
    %c0_i32 = arith.constant 0 : i32
    %c0_i32_0 = arith.constant 0 : i32
    %c0_i32_1 = arith.constant 0 : i32
    return %arg1, %arg2, %c0_i32, %c0_i32_0 : i32, i32, i32, i32
  }
  func.func @transform_17(%arg0: i32, %arg1: i32, %arg2: i32) -> (i32, i32) {
    %c0_i32 = arith.constant 0 : i32
    %c0_i32_0 = arith.constant 0 : i32
    %c0_i32_1 = arith.constant 0 : i32
    return %c0_i32, %c0_i32_0 : i32, i32
  }
  func.func @transform_18(%arg0: i32, %arg1: i32, %arg2: i32) -> (i32, i32) {
    %c0_i32 = arith.constant 0 : i32
    %c0_i32_0 = arith.constant 0 : i32
    %c0_i32_1 = arith.constant 0 : i32
    return %c0_i32, %c0_i32_0 : i32, i32
  }
  func.func @transform_19(%arg0: i32, %arg1: i32, %arg2: i32) -> (i32, i32, i32) {
    %c0_i32 = arith.constant 0 : i32
    %c0_i32_0 = arith.constant 0 : i32
    %c0_i32_1 = arith.constant 0 : i32
    return %arg0, %c0_i32, %c0_i32_0 : i32, i32, i32
  }
}

</mosaic_0001>

<llo_original>
// kernel: speaker_trm_forward.1
$region0: #{speaker_trm_forward.1}
  #allocation0 [shape = 'u32[]', space=smem, size = 0x4, offset = 0x4, fixed_abs, tag = 'smem constant byte address 0x4 - core index']
  #allocation1 [shape = 'u32[144,128]{1,0:T(1,128)}', space=vmem, size = 0x12000, scoped, tag = 'internal scratch']
  #allocation2 [shape = 'f32[8,32]{1,0:T(8,128)}', space=vmem, size = 0x1000, scoped, tag = 'scratch operand']
  #allocation3 [shape = 'f32[8,32]{1,0:T(8,128)}', space=vmem, size = 0x1000, scoped, tag = 'scratch operand']
  %s0 = inlined_call_operand.vmem [shape: f32[2,8,32], index: 0, kind: input, shape index: {}]
  %s1 = inlined_call_operand.vmem [shape: f32[2,8,1], index: 1, kind: input, shape index: {}]
  %s2 = inlined_call_operand.vmem [shape: f32[2,1,8], index: 2, kind: input, shape index: {}]
  %s3 = inlined_call_operand.vmem [shape: f32[2,8,1], index: 3, kind: input, shape index: {}]
  %s4 = inlined_call_operand.vmem [shape: f32[2,1,8], index: 4, kind: input, shape index: {}]
  %s5 = inlined_call_operand.vmem [shape: bf16[2,4,32,96], index: 5, kind: input, shape index: {}]
  %s6 = inlined_call_operand.hbm [shape: f32[2,4,1,96], index: 6, kind: input, shape index: {}]
  %s7 = inlined_call_operand.vmem [shape: bf16[2,4,32,32], index: 7, kind: input, shape index: {}]
  %s8 = inlined_call_operand.hbm [shape: f32[2,4,1,32], index: 8, kind: input, shape index: {}]
  %s9 = inlined_call_operand.vmem [shape: bf16[2,4,32,64], index: 9, kind: input, shape index: {}]
  %s10 = inlined_call_operand.hbm [shape: f32[2,4,1,64], index: 10, kind: input, shape index: {}]
  %s11 = inlined_call_operand.vmem [shape: bf16[2,4,64,32], index: 11, kind: input, shape index: {}]
  %s12 = inlined_call_operand.hbm [shape: f32[2,4,1,32], index: 12, kind: input, shape index: {}]
  %s13 = inlined_call_operand.hbm [shape: f32[2,4,1,32], index: 13, kind: input, shape index: {}]
  %s14 = inlined_call_operand.hbm [shape: f32[2,4,1,32], index: 14, kind: input, shape index: {}]
  %s15 = inlined_call_operand.hbm [shape: f32[2,4,1,32], index: 15, kind: input, shape index: {}]
  %s16 = inlined_call_operand.hbm [shape: f32[2,4,1,32], index: 16, kind: input, shape index: {}]
  %s17 = inlined_call_operand.vmem [shape: f32[1,32], index: 17, kind: input, shape index: {}]
  %s18 = inlined_call_operand.hbm [shape: f32[1,32], index: 18, kind: input, shape index: {}]
  %s19 = inlined_call_operand.vmem [shape: f32[2,8,32], index: 19, kind: output, shape index: {}]
  %s20 = sld [smem:[#allocation0]]
  $region161: #{speaker_trm_forward.1} parent=0
    _
  %s22 = ssub.s32 1, %s20
  %s23 = scalar_select 0, %s22, %s20
  $region1: #{speaker_trm_forward.1} parent=0
    #allocation4 [shape = 'u8[1024]{0}', space=vmem, size = 0x400, scoped, tag = 'input window, operand 6']
    #allocation5 [shape = 's32[2]{0}', space=sflag, size = 0x8, scoped, tag = 'scoped memory for speaker_trm_forward.1']
    #allocation6 [shape = 'u8[1024]{0}', space=vmem, size = 0x400, scoped, tag = 'input window, operand 8']
    #allocation7 [shape = 's32[2]{0}', space=sflag, size = 0x8, scoped, tag = 'scoped memory for speaker_trm_forward.1']
    #allocation8 [shape = 'u8[1024]{0}', space=vmem, size = 0x400, scoped, tag = 'input window, operand 10']
    #allocation9 [shape = 'u8[1024]{0}', space=vmem, size = 0x400, scoped, tag = 'input window, operand 12']
    #allocation10 [shape = 's32[2]{0}', space=sflag, size = 0x8, scoped, tag = 'scoped memory for speaker_trm_forward.1']
    #allocation11 [shape = 'u8[1024]{0}', space=vmem, size = 0x400, scoped, tag = 'input window, operand 13']
    #allocation12 [shape = 'u8[1024]{0}', space=vmem, size = 0x400, scoped, tag = 'input window, operand 14']
    #allocation13 [shape = 's32[2]{0}', space=sflag, size = 0x8, scoped, tag = 'scoped memory for speaker_trm_forward.1']
    #allocation14 [shape = 'u8[1024]{0}', space=vmem, size = 0x400, scoped, tag = 'input window, operand 15']
    #allocation15 [shape = 'u8[1024]{0}', space=vmem, size = 0x400, scoped, tag = 'input window, operand 16']
    #allocation16 [shape = 's32[2]{0}', space=sflag, size = 0x8, scoped, tag = 'scoped memory for speaker_trm_forward.1']
    #allocation17 [shape = 'u8[512]{0}', space=vmem, size = 0x400, scoped, tag = 'input window, operand 18, single buffered']
    %24 = vsyncpa [#allocation5], 0
    %s25 = scalar_lea.sflag [#allocation5], 1
    %26 = vsyncpa %s25, 0
    %27 = vsyncpa [#allocation7], 0
    %s28 = scalar_lea.sflag [#allocation7], 1
    %29 = vsyncpa %s28, 0
    %30 = vsyncpa [#allocation10], 0
    %s31 = scalar_lea.sflag [#allocation10], 1
    %32 = vsyncpa %s31, 0
    %33 = vsyncpa [#allocation13], 0
    %s34 = scalar_lea.sflag [#allocation13], 1
    %35 = vsyncpa %s34, 0
    %36 = vsyncpa [#allocation16], 0
    %s37 = scalar_lea.sflag [#allocation16], 1
    %38 = vsyncpa %s37, 0
    loop: start=0, step=1, limit=18
    $region2: #{speaker_trm_forward.1} parent=1 // loop_pre_header
      _
    $region3: #{speaker_trm_forward.1} parent=1 // loop_header
      %s40 = sphi 0, %s44
      %p41 = scmp.ge.s32.totalorder %s40, 18
      %s47 = sphi 0, %s66
      %s48 = sphi 0, %s62
      %s49 = sphi 0, %s58
      %s50 = sphi 0, %s47
      %s51 = sphi 0, %s48
      %s52 = sphi 0, %s49
      %s53 = sphi 0, %s50
      %s54 = sphi 0, %s51
      %s55 = sphi 0, %s52
      %s69 = sphi 0, %s71
      %s72 = sphi 0, %s69
      %s73 = sphi 0, %s72
      %s89 = sphi 0, %s73
      %s95 = sphi 0, %s97
      %s98 = sphi 0, %s95
      %s99 = sphi 0, %s98
      %s115 = sphi 0, %s99
      %s121 = sphi 0, %s123
      %s124 = sphi 0, %s121
      %s125 = sphi 0, %s124
      %s141 = sphi 0, %s125
      %s147 = sphi 0, %s149
      %s150 = sphi 0, %s147
      %s151 = sphi 0, %s150
      %s167 = sphi 0, %s151
      %s173 = sphi 0, %s175
      %s176 = sphi 0, %s173
      %s177 = sphi 0, %s176
      %s193 = sphi 0, %s177
      %s201 = sphi 0, %s203
      %s204 = sphi 0, %s201
      %s205 = sphi 0, %s204
      %s221 = sphi 0, %s205
      %s229 = sphi 0, %s231
      %s232 = sphi 0, %s229
      %s233 = sphi 0, %s232
      %s249 = sphi 0, %s233
      %s257 = sphi 0, %s259
      %s260 = sphi 0, %s257
      %s261 = sphi 0, %s260
      %s277 = sphi 0, %s261
      %s285 = sphi 0, %s287
      %s288 = sphi 0, %s285
      %s289 = sphi 0, %s288
      %s305 = sphi 0, %s289
      %s313 = sphi 0, %s315
      %s316 = sphi 0, %s313
      %s317 = sphi 0, %s316
      %s333 = sphi 0, %s317
      %s341 = sphi 0, %s343
      %s344 = sphi 0, %s341
      %s345 = sphi 0, %s344
      %s361 = sphi 0, %s345
      %s369 = sphi 0, %s371
      %s372 = sphi 0, %s369
      %s373 = sphi 0, %s372
      %s389 = sphi 0, %s373
      %s397 = sphi 0, %s399
      %s400 = sphi 0, %s397
      %s401 = sphi 0, %s400
      %s417 = sphi 0, %s401
      %s425 = sphi 0, %s427
      %s428 = sphi 0, %s425
      %s429 = sphi 0, %s428
      %s445 = sphi 0, %s429
      %s453 = sphi 0, %s455
      %s456 = sphi 0, %s453
      %s457 = sphi 0, %s456
      %s473 = sphi 0, %s457
      %s481 = sphi 0, %s483
      %s484 = sphi 0, %s481
      %s485 = sphi 0, %s484
      %s501 = sphi 0, %s485
      %s509 = sphi 0, %s511
      %s512 = sphi 0, %s509
      %s513 = sphi 0, %s512
      %s529 = sphi 0, %s513
      %s533 = sphi 0, %s533
      %s535 = sphi 0, %s533
      %s536 = sphi 0, %s535
      %s550 = sphi 0, %s536
      %s554 = sphi 0, %s554
      %s556 = sphi 0, %s554
      %s557 = sphi 0, %s556
      %s571 = sphi 0, %s557
      %s577 = sphi 0, %s579
      %s580 = sphi 0, %s577
      %s581 = sphi 0, %s580
      %s597 = sphi 0, %s581
    $region4: #{speaker_trm_forward.1} parent=1 // loop_header_branch
      %43 = sbr.rel (%p41) target = $region8
    $region5: #{speaker_trm_forward.1} parent=1 // loop_body
      %s45 = ssub.s32 %s40, 1
      %s46 = ssub.s32 %s40, 2
      %s56 = sadd.s32 1, %s49
      %p57 = scmp.ge.s32.totalorder %s56, 4
      %s58 = scalar_select %p57, 0, %s56
      %s59 = sadd.s32 1, %s48
      %s60 = scalar_select %p57, %s59, %s48
      %p61 = scmp.ge.s32.totalorder %s60, 2
      %s62 = scalar_select %p61, 0, %s60
      %s63 = sadd.s32 1, %s47
      %s64 = scalar_select %p61, %s63, %s47
      %p65 = scmp.ge.s32.totalorder %s64, 2
      %s66 = scalar_select %p65, 0, %s64
      %s67 = ssub.s32 %s47, %s66
      %p68 = scmp.eq.s32.totalorder %s67, 0
      %s70 = sadd.s32 %s69, 1
      %s71 = scalar_select %p68, %s69, %s70
      %p74 = pneg %p68
      %p75 = scmp.eq.s32.totalorder %s40, 15
      %p76 = por %p74, %p75
      %p77 = scmp.ne.s32.totalorder %s69, %s72
      %p78 = scmp.eq.s32.totalorder %s40, 0
      %p79 = por %p77, %p78
      %p80 = scmp.ne.s32.totalorder %s69, %s72
      %p81 = scmp.eq.s32.totalorder %s45, 15
      %p82 = por %p80, %p81
      %p83 = scmp.ne.s32.totalorder %s72, %s73
      %p84 = scmp.eq.s32.totalorder %s45, 0
      %p85 = por %p83, %p84
      %p86 = scmp.ne.s32.totalorder %s72, %s73
      %p87 = scmp.eq.s32.totalorder %s46, 15
      %p88 = por %p86, %p87
      %p90 = scmp.ne.s32.totalorder %s73, %s89
      %p91 = scmp.eq.s32.totalorder %s46, 0
      %p92 = por %p90, %p91
      %s93 = ssub.s32 %s47, %s66
      %p94 = scmp.eq.s32.totalorder %s93, 0
      %s96 = sadd.s32 %s95, 1
      %s97 = scalar_select %p94, %s95, %s96
      %p100 = pneg %p94
      %p101 = scmp.eq.s32.totalorder %s40, 15
      %p102 = por %p100, %p101
      %p103 = scmp.ne.s32.totalorder %s95, %s98
      %p104 = scmp.eq.s32.totalorder %s40, 0
      %p105 = por %p103, %p104
      %p106 = scmp.ne.s32.totalorder %s95, %s98
      %p107 = scmp.eq.s32.totalorder %s45, 15
      %p108 = por %p106, %p107
      %p109 = scmp.ne.s32.totalorder %s98, %s99
      %p110 = scmp.eq.s32.totalorder %s45, 0
      %p111 = por %p109, %p110
      %p112 = scmp.ne.s32.totalorder %s98, %s99
      %p113 = scmp.eq.s32.totalorder %s46, 15
      %p114 = por %p112, %p113
      %p116 = scmp.ne.s32.totalorder %s99, %s115
      %p117 = scmp.eq.s32.totalorder %s46, 0
      %p118 = por %p116, %p117
      %s119 = ssub.s32 %s47, %s66
      %p120 = scmp.eq.s32.totalorder %s119, 0
      %s122 = sadd.s32 %s121, 1
      %s123 = scalar_select %p120, %s121, %s122
      %p126 = pneg %p120
      %p127 = scmp.eq.s32.totalorder %s40, 15
      %p128 = por %p126, %p127
      %p129 = scmp.ne.s32.totalorder %s121, %s124
      %p130 = scmp.eq.s32.totalorder %s40, 0
      %p131 = por %p129, %p130
      %p132 = scmp.ne.s32.totalorder %s121, %s124
      %p133 = scmp.eq.s32.totalorder %s45, 15
      %p134 = por %p132, %p133
      %p135 = scmp.ne.s32.totalorder %s124, %s125
      %p136 = scmp.eq.s32.totalorder %s45, 0
      %p137 = por %p135, %p136
      %p138 = scmp.ne.s32.totalorder %s124, %s125
      %p139 = scmp.eq.s32.totalorder %s46, 15
      %p140 = por %p138, %p139
      %p142 = scmp.ne.s32.totalorder %s125, %s141
      %p143 = scmp.eq.s32.totalorder %s46, 0
      %p144 = por %p142, %p143
      %s145 = ssub.s32 %s47, %s66
      %p146 = scmp.eq.s32.totalorder %s145, 0
      %s148 = sadd.s32 %s147, 1
      %s149 = scalar_select %p146, %s147, %s148
      %p152 = pneg %p146
      %p153 = scmp.eq.s32.totalorder %s40, 15
      %p154 = por %p152, %p153
      %p155 = scmp.ne.s32.totalorder %s147, %s150
      %p156 = scmp.eq.s32.totalorder %s40, 0
      %p157 = por %p155, %p156
      %p158 = scmp.ne.s32.totalorder %s147, %s150
      %p159 = scmp.eq.s32.totalorder %s45, 15
      %p160 = por %p158, %p159
      %p161 = scmp.ne.s32.totalorder %s150, %s151
      %p162 = scmp.eq.s32.totalorder %s45, 0
      %p163 = por %p161, %p162
      %p164 = scmp.ne.s32.totalorder %s150, %s151
      %p165 = scmp.eq.s32.totalorder %s46, 15
      %p166 = por %p164, %p165
      %p168 = scmp.ne.s32.totalorder %s151, %s167
      %p169 = scmp.eq.s32.totalorder %s46, 0
      %p170 = por %p168, %p169
      %s171 = ssub.s32 %s47, %s66
      %p172 = scmp.eq.s32.totalorder %s171, 0
      %s174 = sadd.s32 %s173, 1
      %s175 = scalar_select %p172, %s173, %s174
      %p178 = pneg %p172
      %p179 = scmp.eq.s32.totalorder %s40, 15
      %p180 = por %p178, %p179
      %p181 = scmp.ne.s32.totalorder %s173, %s176
      %p182 = scmp.eq.s32.totalorder %s40, 0
      %p183 = por %p181, %p182
      %p184 = scmp.ne.s32.totalorder %s173, %s176
      %p185 = scmp.eq.s32.totalorder %s45, 15
      %p186 = por %p184, %p185
      %p187 = scmp.ne.s32.totalorder %s176, %s177
      %p188 = scmp.eq.s32.totalorder %s45, 0
      %p189 = por %p187, %p188
      %p190 = scmp.ne.s32.totalorder %s176, %s177
      %p191 = scmp.eq.s32.totalorder %s46, 15
      %p192 = por %p190, %p191
      %p194 = scmp.ne.s32.totalorder %s177, %s193
      %p195 = scmp.eq.s32.totalorder %s46, 0
      %p196 = por %p194, %p195
      %s197 = ssub.s32 %s48, %s62
      %s198 = ssub.s32 %s49, %s58
      %s199 = sor.u32 %s197, %s198
      %p200 = scmp.eq.s32.totalorder %s199, 0
      %s202 = sadd.s32 %s201, 1
      %s203 = scalar_select %p200, %s201, %s202
      %p206 = pneg %p200
      %p207 = scmp.eq.s32.totalorder %s40, 15
      %p208 = por %p206, %p207
      %p209 = scmp.ne.s32.totalorder %s201, %s204
      %p210 = scmp.eq.s32.totalorder %s40, 0
      %p211 = por %p209, %p210
      %p212 = scmp.ne.s32.totalorder %s201, %s204
      %p213 = scmp.eq.s32.totalorder %s45, 15
      %p214 = por %p212, %p213
      %p215 = scmp.ne.s32.totalorder %s204, %s205
      %p216 = scmp.eq.s32.totalorder %s45, 0
      %p217 = por %p215, %p216
      %p218 = scmp.ne.s32.totalorder %s204, %s205
      %p219 = scmp.eq.s32.totalorder %s46, 15
      %p220 = por %p218, %p219
      %p222 = scmp.ne.s32.totalorder %s205, %s221
      %p223 = scmp.eq.s32.totalorder %s46, 0
      %p224 = por %p222, %p223
      %s225 = ssub.s32 %s48, %s62
      %s226 = ssub.s32 %s49, %s58
      %s227 = sor.u32 %s225, %s226
      %p228 = scmp.eq.s32.totalorder %s227, 0
      %s230 = sadd.s32 %s229, 1
      %s231 = scalar_select %p228, %s229, %s230
      %p234 = pneg %p228
      %p235 = scmp.eq.s32.totalorder %s40, 15
      %p236 = por %p234, %p235
      %p237 = scmp.ne.s32.totalorder %s229, %s232
      %p238 = scmp.eq.s32.totalorder %s40, 0
      %p239 = por %p237, %p238
      %p240 = scmp.ne.s32.totalorder %s229, %s232
      %p241 = scmp.eq.s32.totalorder %s45, 15
      %p242 = por %p240, %p241
      %p243 = scmp.ne.s32.totalorder %s232, %s233
      %p244 = scmp.eq.s32.totalorder %s45, 0
      %p245 = por %p243, %p244
      %p246 = scmp.ne.s32.totalorder %s232, %s233
      %p247 = scmp.eq.s32.totalorder %s46, 15
      %p248 = por %p246, %p247
      %p250 = scmp.ne.s32.totalorder %s233, %s249
      %p251 = scmp.eq.s32.totalorder %s46, 0
      %p252 = por %p250, %p251
      %s253 = ssub.s32 %s48, %s62
      %s254 = ssub.s32 %s49, %s58
      %s255 = sor.u32 %s253, %s254
      %p256 = scmp.eq.s32.totalorder %s255, 0
      %s258 = sadd.s32 %s257, 1
      %s259 = scalar_select %p256, %s257, %s258
      %p262 = pneg %p256
      %p263 = scmp.eq.s32.totalorder %s40, 15
      %p264 = por %p262, %p263
      %p265 = scmp.ne.s32.totalorder %s257, %s260
      %p266 = scmp.eq.s32.totalorder %s40, 0
      %p267 = por %p265, %p266
      %p268 = scmp.ne.s32.totalorder %s257, %s260
      %p269 = scmp.eq.s32.totalorder %s45, 15
      %p270 = por %p268, %p269
      %p271 = scmp.ne.s32.totalorder %s260, %s261
      %p272 = scmp.eq.s32.totalorder %s45, 0
      %p273 = por %p271, %p272
      %p274 = scmp.ne.s32.totalorder %s260, %s261
      %p275 = scmp.eq.s32.totalorder %s46, 15
      %p276 = por %p274, %p275
      %p278 = scmp.ne.s32.totalorder %s261, %s277
      %p279 = scmp.eq.s32.totalorder %s46, 0
      %p280 = por %p278, %p279
      %s281 = ssub.s32 %s48, %s62
      %s282 = ssub.s32 %s49, %s58
      %s283 = sor.u32 %s281, %s282
      %p284 = scmp.eq.s32.totalorder %s283, 0
      %s286 = sadd.s32 %s285, 1
      %s287 = scalar_select %p284, %s285, %s286
      %p290 = pneg %p284
      %p291 = scmp.eq.s32.totalorder %s40, 15
      %p292 = por %p290, %p291
      %p293 = scmp.ne.s32.totalorder %s285, %s288
      %p294 = scmp.eq.s32.totalorder %s40, 0
      %p295 = por %p293, %p294
      %p296 = scmp.ne.s32.totalorder %s285, %s288
      %p297 = scmp.eq.s32.totalorder %s45, 15
      %p298 = por %p296, %p297
      %p299 = scmp.ne.s32.totalorder %s288, %s289
      %p300 = scmp.eq.s32.totalorder %s45, 0
      %p301 = por %p299, %p300
      %p302 = scmp.ne.s32.totalorder %s288, %s289
      %p303 = scmp.eq.s32.totalorder %s46, 15
      %p304 = por %p302, %p303
      %p306 = scmp.ne.s32.totalorder %s289, %s305
      %p307 = scmp.eq.s32.totalorder %s46, 0
      %p308 = por %p306, %p307
      %s309 = ssub.s32 %s48, %s62
      %s310 = ssub.s32 %s49, %s58
      %s311 = sor.u32 %s309, %s310
      %p312 = scmp.eq.s32.totalorder %s311, 0
      %s314 = sadd.s32 %s313, 1
      %s315 = scalar_select %p312, %s313, %s314
      %p318 = pneg %p312
      %p319 = scmp.eq.s32.totalorder %s40, 15
      %p320 = por %p318, %p319
      %p321 = scmp.ne.s32.totalorder %s313, %s316
      %p322 = scmp.eq.s32.totalorder %s40, 0
      %p323 = por %p321, %p322
      %p324 = scmp.ne.s32.totalorder %s313, %s316
      %p325 = scmp.eq.s32.totalorder %s45, 15
      %p326 = por %p324, %p325
      %p327 = scmp.ne.s32.totalorder %s316, %s317
      %p328 = scmp.eq.s32.totalorder %s45, 0
      %p329 = por %p327, %p328
      %p330 = scmp.ne.s32.totalorder %s316, %s317
      %p331 = scmp.eq.s32.totalorder %s46, 15
      %p332 = por %p330, %p331
      %p334 = scmp.ne.s32.totalorder %s317, %s333
      %p335 = scmp.eq.s32.totalorder %s46, 0
      %p336 = por %p334, %p335
      %s337 = ssub.s32 %s48, %s62
      %s338 = ssub.s32 %s49, %s58
      %s339 = sor.u32 %s337, %s338
      %p340 = scmp.eq.s32.totalorder %s339, 0
      %s342 = sadd.s32 %s341, 1
      %s343 = scalar_select %p340, %s341, %s342
      %p346 = pneg %p340
      %p347 = scmp.eq.s32.totalorder %s40, 15
      %p348 = por %p346, %p347
      %p349 = scmp.ne.s32.totalorder %s341, %s344
      %p350 = scmp.eq.s32.totalorder %s40, 0
      %p351 = por %p349, %p350
      %p352 = scmp.ne.s32.totalorder %s341, %s344
      %p353 = scmp.eq.s32.totalorder %s45, 15
      %p354 = por %p352, %p353
      %p355 = scmp.ne.s32.totalorder %s344, %s345
      %p356 = scmp.eq.s32.totalorder %s45, 0
      %p357 = por %p355, %p356
      %p358 = scmp.ne.s32.totalorder %s344, %s345
      %p359 = scmp.eq.s32.totalorder %s46, 15
      %p360 = por %p358, %p359
      %p362 = scmp.ne.s32.totalorder %s345, %s361
      %p363 = scmp.eq.s32.totalorder %s46, 0
      %p364 = por %p362, %p363
      %s365 = ssub.s32 %s48, %s62
      %s366 = ssub.s32 %s49, %s58
      %s367 = sor.u32 %s365, %s366
      %p368 = scmp.eq.s32.totalorder %s367, 0
      %s370 = sadd.s32 %s369, 1
      %s371 = scalar_select %p368, %s369, %s370
      %p374 = pneg %p368
      %p375 = scmp.eq.s32.totalorder %s40, 15
      %p376 = por %p374, %p375
      %p377 = scmp.ne.s32.totalorder %s369, %s372
      %p378 = scmp.eq.s32.totalorder %s40, 0
      %p379 = por %p377, %p378
      %p380 = scmp.ne.s32.totalorder %s369, %s372
      %p381 = scmp.eq.s32.totalorder %s45, 15
      %p382 = por %p380, %p381
      %p383 = scmp.ne.s32.totalorder %s372, %s373
      %p384 = scmp.eq.s32.totalorder %s45, 0
      %p385 = por %p383, %p384
      %p386 = scmp.ne.s32.totalorder %s372, %s373
      %p387 = scmp.eq.s32.totalorder %s46, 15
      %p388 = por %p386, %p387
      %p390 = scmp.ne.s32.totalorder %s373, %s389
      %p391 = scmp.eq.s32.totalorder %s46, 0
      %p392 = por %p390, %p391
      %s393 = ssub.s32 %s48, %s62
      %s394 = ssub.s32 %s49, %s58
      %s395 = sor.u32 %s393, %s394
      %p396 = scmp.eq.s32.totalorder %s395, 0
      %s398 = sadd.s32 %s397, 1
      %s399 = scalar_select %p396, %s397, %s398
      %p402 = pneg %p396
      %p403 = scmp.eq.s32.totalorder %s40, 15
      %p404 = por %p402, %p403
      %p405 = scmp.ne.s32.totalorder %s397, %s400
      %p406 = scmp.eq.s32.totalorder %s40, 0
      %p407 = por %p405, %p406
      %p408 = scmp.ne.s32.totalorder %s397, %s400
      %p409 = scmp.eq.s32.totalorder %s45, 15
      %p410 = por %p408, %p409
      %p411 = scmp.ne.s32.totalorder %s400, %s401
      %p412 = scmp.eq.s32.totalorder %s45, 0
      %p413 = por %p411, %p412
      %p414 = scmp.ne.s32.totalorder %s400, %s401
      %p415 = scmp.eq.s32.totalorder %s46, 15
      %p416 = por %p414, %p415
      %p418 = scmp.ne.s32.totalorder %s401, %s417
      %p419 = scmp.eq.s32.totalorder %s46, 0
      %p420 = por %p418, %p419
      %s421 = ssub.s32 %s48, %s62
      %s422 = ssub.s32 %s49, %s58
      %s423 = sor.u32 %s421, %s422
      %p424 = scmp.eq.s32.totalorder %s423, 0
      %s426 = sadd.s32 %s425, 1
      %s427 = scalar_select %p424, %s425, %s426
      %p430 = pneg %p424
      %p431 = scmp.eq.s32.totalorder %s40, 15
      %p432 = por %p430, %p431
      %p433 = scmp.ne.s32.totalorder %s425, %s428
      %p434 = scmp.eq.s32.totalorder %s40, 0
      %p435 = por %p433, %p434
      %p436 = scmp.ne.s32.totalorder %s425, %s428
      %p437 = scmp.eq.s32.totalorder %s45, 15
      %p438 = por %p436, %p437
      %p439 = scmp.ne.s32.totalorder %s428, %s429
      %p440 = scmp.eq.s32.totalorder %s45, 0
      %p441 = por %p439, %p440
      %p442 = scmp.ne.s32.totalorder %s428, %s429
      %p443 = scmp.eq.s32.totalorder %s46, 15
      %p444 = por %p442, %p443
      %p446 = scmp.ne.s32.totalorder %s429, %s445
      %p447 = scmp.eq.s32.totalorder %s46, 0
      %p448 = por %p446, %p447
      %s449 = ssub.s32 %s48, %s62
      %s450 = ssub.s32 %s49, %s58
      %s451 = sor.u32 %s449, %s450
      %p452 = scmp.eq.s32.totalorder %s451, 0
      %s454 = sadd.s32 %s453, 1
      %s455 = scalar_select %p452, %s453, %s454
      %p458 = pneg %p452
      %p459 = scmp.eq.s32.totalorder %s40, 15
      %p460 = por %p458, %p459
      %p461 = scmp.ne.s32.totalorder %s453, %s456
      %p462 = scmp.eq.s32.totalorder %s40, 0
      %p463 = por %p461, %p462
      %p464 = scmp.ne.s32.totalorder %s453, %s456
      %p465 = scmp.eq.s32.totalorder %s45, 15
      %p466 = por %p464, %p465
      %p467 = scmp.ne.s32.totalorder %s456, %s457
      %p468 = scmp.eq.s32.totalorder %s45, 0
      %p469 = por %p467, %p468
      %p470 = scmp.ne.s32.totalorder %s456, %s457
      %p471 = scmp.eq.s32.totalorder %s46, 15
      %p472 = por %p470, %p471
      %p474 = scmp.ne.s32.totalorder %s457, %s473
      %p475 = scmp.eq.s32.totalorder %s46, 0
      %p476 = por %p474, %p475
      %s477 = ssub.s32 %s48, %s62
      %s478 = ssub.s32 %s49, %s58
      %s479 = sor.u32 %s477, %s478
      %p480 = scmp.eq.s32.totalorder %s479, 0
      %s482 = sadd.s32 %s481, 1
      %s483 = scalar_select %p480, %s481, %s482
      %p486 = pneg %p480
      %p487 = scmp.eq.s32.totalorder %s40, 15
      %p488 = por %p486, %p487
      %p489 = scmp.ne.s32.totalorder %s481, %s484
      %p490 = scmp.eq.s32.totalorder %s40, 0
      %p491 = por %p489, %p490
      %p492 = scmp.ne.s32.totalorder %s481, %s484
      %p493 = scmp.eq.s32.totalorder %s45, 15
      %p494 = por %p492, %p493
      %p495 = scmp.ne.s32.totalorder %s484, %s485
      %p496 = scmp.eq.s32.totalorder %s45, 0
      %p497 = por %p495, %p496
      %p498 = scmp.ne.s32.totalorder %s484, %s485
      %p499 = scmp.eq.s32.totalorder %s46, 15
      %p500 = por %p498, %p499
      %p502 = scmp.ne.s32.totalorder %s485, %s501
      %p503 = scmp.eq.s32.totalorder %s46, 0
      %p504 = por %p502, %p503
      %s505 = ssub.s32 %s48, %s62
      %s506 = ssub.s32 %s49, %s58
      %s507 = sor.u32 %s505, %s506
      %p508 = scmp.eq.s32.totalorder %s507, 0
      %s510 = sadd.s32 %s509, 1
      %s511 = scalar_select %p508, %s509, %s510
      %p514 = pneg %p508
      %p515 = scmp.eq.s32.totalorder %s40, 15
      %p516 = por %p514, %p515
      %p517 = scmp.ne.s32.totalorder %s509, %s512
      %p518 = scmp.eq.s32.totalorder %s40, 0
      %p519 = por %p517, %p518
      %p520 = scmp.ne.s32.totalorder %s509, %s512
      %p521 = scmp.eq.s32.totalorder %s45, 15
      %p522 = por %p520, %p521
      %p523 = scmp.ne.s32.totalorder %s512, %s513
      %p524 = scmp.eq.s32.totalorder %s45, 0
      %p525 = por %p523, %p524
      %p526 = scmp.ne.s32.totalorder %s512, %s513
      %p527 = scmp.eq.s32.totalorder %s46, 15
      %p528 = por %p526, %p527
      %p530 = scmp.ne.s32.totalorder %s513, %s529
      %p531 = scmp.eq.s32.totalorder %s46, 0
      %p532 = por %p530, %p531
      %s534 = sadd.s32 %s533, 1
      %p537 = scmp.eq.s32.totalorder %s40, 15
      %p538 = scmp.ne.s32.totalorder %s533, %s535
      %p539 = scmp.eq.s32.totalorder %s40, 0
      %p540 = por %p538, %p539
      %p541 = scmp.ne.s32.totalorder %s533, %s535
      %p542 = scmp.eq.s32.totalorder %s45, 15
      %p543 = por %p541, %p542
      %p544 = scmp.ne.s32.totalorder %s535, %s536
      %p545 = scmp.eq.s32.totalorder %s45, 0
      %p546 = por %p544, %p545
      %p547 = scmp.ne.s32.totalorder %s535, %s536
      %p548 = scmp.eq.s32.totalorder %s46, 15
      %p549 = por %p547, %p548
      %p551 = scmp.ne.s32.totalorder %s536, %s550
      %p552 = scmp.eq.s32.totalorder %s46, 0
      %p553 = por %p551, %p552
      %s555 = sadd.s32 %s554, 1
      %p558 = scmp.eq.s32.totalorder %s40, 15
      %p559 = scmp.ne.s32.totalorder %s554, %s556
      %p560 = scmp.eq.s32.totalorder %s40, 0
      %p561 = por %p559, %p560
      %p562 = scmp.ne.s32.totalorder %s554, %s556
      %p563 = scmp.eq.s32.totalorder %s45, 15
      %p564 = por %p562, %p563
      %p565 = scmp.ne.s32.totalorder %s556, %s557
      %p566 = scmp.eq.s32.totalorder %s45, 0
      %p567 = por %p565, %p566
      %p568 = scmp.ne.s32.totalorder %s556, %s557
      %p569 = scmp.eq.s32.totalorder %s46, 15
      %p570 = por %p568, %p569
      %p572 = scmp.ne.s32.totalorder %s557, %s571
      %p573 = scmp.eq.s32.totalorder %s46, 0
      %p574 = por %p572, %p573
      %s575 = ssub.s32 %s47, %s66
      %p576 = scmp.eq.s32.totalorder %s575, 0
      %s578 = sadd.s32 %s577, 1
      %s579 = scalar_select %p576, %s577, %s578
      %p582 = pneg %p576
      %p583 = scmp.eq.s32.totalorder %s40, 15
      %p584 = por %p582, %p583
      %p585 = scmp.ne.s32.totalorder %s577, %s580
      %p586 = scmp.eq.s32.totalorder %s40, 0
      %p587 = por %p585, %p586
      %p588 = scmp.ne.s32.totalorder %s577, %s580
      %p589 = scmp.eq.s32.totalorder %s45, 15
      %p590 = por %p588, %p589
      %p591 = scmp.ne.s32.totalorder %s580, %s581
      %p592 = scmp.eq.s32.totalorder %s45, 0
      %p593 = por %p591, %p592
      %p594 = scmp.ne.s32.totalorder %s580, %s581
      %p595 = scmp.eq.s32.totalorder %s46, 15
      %p596 = por %p594, %p595
      %p598 = scmp.ne.s32.totalorder %s581, %s597
      %p599 = scmp.eq.s32.totalorder %s46, 0
      %p600 = por %p598, %p599
      %p601 = scmp.le.s32.totalorder 1, %s40
      %p602 = scmp.lt.s32.totalorder %s40, 17
      %p603 = pnand %p601, %p602
      %p604 = pneg %p603
      // Predicated region
      $region9: #{speaker_trm_forward.1} parent=5 // pred_check
        _
      $region10: #{speaker_trm_forward.1} parent=5 // pred_check_branch
        %606 = sbr.rel (%p603) target = $region12
      $region11: #{speaker_trm_forward.1} parent=5 // pred_region
        %s607 = ssub.s32 %s40, 1
        // Predicated region
        $region13: #{speaker_trm_forward.1} parent=11 // pred_check
          %p608 = pneg %p546
        $region14: #{speaker_trm_forward.1} parent=11 // pred_check_branch
          %610 = sbr.rel (%p608) target = $region16
        $region15: #{speaker_trm_forward.1} parent=11 // pred_region
          _
        $region16: #{speaker_trm_forward.1} parent=11 // pred_fallthru
          _
        // Predicated region
        $region17: #{speaker_trm_forward.1} parent=11 // pred_check
          %p611 = pneg %p567
        $region18: #{speaker_trm_forward.1} parent=11 // pred_check_branch
          %613 = sbr.rel (%p611) target = $region20
        $region19: #{speaker_trm_forward.1} parent=11 // pred_region
          %s615 = ssub.s32 16, 16
          %616 = vsyncadd [#allocation16], %s615
          %s618 = sshll.u32 [#allocation17], 4
          %s619 = int_to_ptr.vmem [resolvable:$true] %s618
          %621 = dma.hbm_to_vmem [thread:$0]  %s18, 16, %s619, [#allocation16]
        $region20: #{speaker_trm_forward.1} parent=11 // pred_fallthru
          _
      $region12: #{speaker_trm_forward.1} parent=5 // pred_fallthru
        _
      %p622 = scmp.lt.s32.totalorder %s40, 16
      // Predicated region
      $region21: #{speaker_trm_forward.1} parent=5 // pred_check
        %p623 = pneg %p622
      $region22: #{speaker_trm_forward.1} parent=5 // pred_check_branch
        %625 = sbr.rel (%p623) target = $region24
      $region23: #{speaker_trm_forward.1} parent=5 // pred_region
        // Predicated region
        $region25: #{speaker_trm_forward.1} parent=23 // pred_check
          %p626 = pneg %p79
        $region26: #{speaker_trm_forward.1} parent=23 // pred_check_branch
          %628 = sbr.rel (%p626) target = $region28
        $region27: #{speaker_trm_forward.1} parent=23 // pred_region
          %p629 = scmp.lt.s32.totalorder %s47, 1
          %s630 = scalar_select %p629, %s47, 1
          %s631 = smul.addr %s630, 8
          %s632 = scalar_lea.vmem %s0, %s631
        $region28: #{speaker_trm_forward.1} parent=23 // pred_fallthru
          _
        // Predicated region
        $region29: #{speaker_trm_forward.1} parent=23 // pred_check
          %p633 = pneg %p105
        $region30: #{speaker_trm_forward.1} parent=23 // pred_check_branch
          %635 = sbr.rel (%p633) target = $region32
        $region31: #{speaker_trm_forward.1} parent=23 // pred_region
          %p636 = scmp.lt.s32.totalorder %s47, 1
          %s637 = scalar_select %p636, %s47, 1
          %s638 = smul.addr %s637, 8
          %s639 = scalar_lea.vmem %s1, %s638
        $region32: #{speaker_trm_forward.1} parent=23 // pred_fallthru
          _
        // Predicated region
        $region33: #{speaker_trm_forward.1} parent=23 // pred_check
          %p640 = pneg %p131
        $region34: #{speaker_trm_forward.1} parent=23 // pred_check_branch
          %642 = sbr.rel (%p640) target = $region36
        $region35: #{speaker_trm_forward.1} parent=23 // pred_region
          %p643 = scmp.lt.s32.totalorder %s47, 1
          %s644 = scalar_select %p643, %s47, 1
          %s645 = scalar_lea.vmem %s2, %s644
        $region36: #{speaker_trm_forward.1} parent=23 // pred_fallthru
          _
        // Predicated region
        $region37: #{speaker_trm_forward.1} parent=23 // pred_check
          %p646 = pneg %p157
        $region38: #{speaker_trm_forward.1} parent=23 // pred_check_branch
          %648 = sbr.rel (%p646) target = $region40
        $region39: #{speaker_trm_forward.1} parent=23 // pred_region
          %p649 = scmp.lt.s32.totalorder %s47, 1
          %s650 = scalar_select %p649, %s47, 1
          %s651 = smul.addr %s650, 8
          %s652 = scalar_lea.vmem %s3, %s651
        $region40: #{speaker_trm_forward.1} parent=23 // pred_fallthru
          _
        // Predicated region
        $region41: #{speaker_trm_forward.1} parent=23 // pred_check
          %p653 = pneg %p183
        $region42: #{speaker_trm_forward.1} parent=23 // pred_check_branch
          %655 = sbr.rel (%p653) target = $region44
        $region43: #{speaker_trm_forward.1} parent=23 // pred_region
          %p656 = scmp.lt.s32.totalorder %s47, 1
          %s657 = scalar_select %p656, %s47, 1
          %s658 = scalar_lea.vmem %s4, %s657
        $region44: #{speaker_trm_forward.1} parent=23 // pred_fallthru
          _
        // Predicated region
        $region45: #{speaker_trm_forward.1} parent=23 // pred_check
          %p659 = pneg %p211
        $region46: #{speaker_trm_forward.1} parent=23 // pred_check_branch
          %661 = sbr.rel (%p659) target = $region48
        $region47: #{speaker_trm_forward.1} parent=23 // pred_region
          %p662 = scmp.lt.s32.totalorder %s48, 1
          %s663 = scalar_select %p662, %s48, 1
          %p664 = scmp.lt.s32.totalorder %s49, 3
          %s665 = scalar_select %p664, %s49, 3
          %s666 = smul.addr %s665, 4
          %s667 = smul.addr %s663, 16
          %s668 = sadd.s32 %s666, %s667
          %s669 = smul.addr %s668, 4
          %s670 = scalar_lea.vmem %s5, %s669
        $region48: #{speaker_trm_forward.1} parent=23 // pred_fallthru
          _
        // Predicated region
        $region49: #{speaker_trm_forward.1} parent=23 // pred_check
          %p671 = pneg %p239
        $region50: #{speaker_trm_forward.1} parent=23 // pred_check_branch
          %673 = sbr.rel (%p671) target = $region52
        $region51: #{speaker_trm_forward.1} parent=23 // pred_region
          %s674 = sand.u32 %s229, 1
          %s675 = scalar_lea.sflag [#allocation5], %s674
          %s676 = sand.u32 %s229, 1
          %s677 = scalar_lea.vmem [#allocation4], %s676
          %s679 = ssub.s32 16, 16
          %680 = vsyncadd %s675, %s679
          %s681 = smul.addr %s48, 4
          %s682 = sadd.s32 %s49, %s681
          %s683 = smul.addr %s682, 16
          %s684 = scalar_lea.hbm %s6, %s683
          %s686 = sshll.u32 %s677, 4
          %s687 = int_to_ptr.vmem [resolvable:$true] %s686
          %689 = dma.hbm_to_vmem [thread:$0]  %s684, 16, %s687, %s675
        $region52: #{speaker_trm_forward.1} parent=23 // pred_fallthru
          _
        // Predicated region
        $region53: #{speaker_trm_forward.1} parent=23 // pred_check
          %p690 = pneg %p267
        $region54: #{speaker_trm_forward.1} parent=23 // pred_check_branch
          %692 = sbr.rel (%p690) target = $region56
        $region55: #{speaker_trm_forward.1} parent=23 // pred_region
          %p693 = scmp.lt.s32.totalorder %s48, 1
          %s694 = scalar_select %p693, %s48, 1
          %p695 = scmp.lt.s32.totalorder %s49, 3
          %s696 = scalar_select %p695, %s49, 3
          %s697 = smul.addr %s696, 4
          %s698 = smul.addr %s694, 16
          %s699 = sadd.s32 %s697, %s698
          %s700 = smul.addr %s699, 4
          %s701 = scalar_lea.vmem %s7, %s700
        $region56: #{speaker_trm_forward.1} parent=23 // pred_fallthru
          _
        // Predicated region
        $region57: #{speaker_trm_forward.1} parent=23 // pred_check
          %p702 = pneg %p295
        $region58: #{speaker_trm_forward.1} parent=23 // pred_check_branch
          %704 = sbr.rel (%p702) target = $region60
        $region59: #{speaker_trm_forward.1} parent=23 // pred_region
          %s705 = sand.u32 %s40, 1
          %s706 = scalar_lea.sflag [#allocation7], %s705
          %s707 = sand.u32 %s285, 1
          %s708 = scalar_lea.vmem [#allocation6], %s707
          %s710 = ssub.s32 16, 16
          %711 = vsyncadd %s706, %s710
          %s712 = smul.addr %s48, 4
          %s713 = sadd.s32 %s49, %s712
          %s714 = smul.addr %s713, 16
          %s715 = scalar_lea.hbm %s8, %s714
          %s717 = sshll.u32 %s708, 4
          %s718 = int_to_ptr.vmem [resolvable:$true] %s717
          %720 = dma.hbm_to_vmem [thread:$0]  %s715, 16, %s718, %s706
        $region60: #{speaker_trm_forward.1} parent=23 // pred_fallthru
          _
        // Predicated region
        $region61: #{speaker_trm_forward.1} parent=23 // pred_check
          %p721 = pneg %p323
        $region62: #{speaker_trm_forward.1} parent=23 // pred_check_branch
          %723 = sbr.rel (%p721) target = $region64
        $region63: #{speaker_trm_forward.1} parent=23 // pred_region
          %p724 = scmp.lt.s32.totalorder %s48, 1
          %s725 = scalar_select %p724, %s48, 1
          %p726 = scmp.lt.s32.totalorder %s49, 3
          %s727 = scalar_select %p726, %s49, 3
          %s728 = smul.addr %s727, 4
          %s729 = smul.addr %s725, 16
          %s730 = sadd.s32 %s728, %s729
          %s731 = smul.addr %s730, 4
          %s732 = scalar_lea.vmem %s9, %s731
        $region64: #{speaker_trm_forward.1} parent=23 // pred_fallthru
          _
        // Predicated region
        $region65: #{speaker_trm_forward.1} parent=23 // pred_check
          %p733 = pneg %p351
        $region66: #{speaker_trm_forward.1} parent=23 // pred_check_branch
          %735 = sbr.rel (%p733) target = $region68
        $region67: #{speaker_trm_forward.1} parent=23 // pred_region
          %s736 = sand.u32 %s40, 1
          %s737 = scalar_lea.sflag [#allocation7], %s736
          %s738 = sand.u32 %s341, 1
          %s739 = scalar_lea.vmem [#allocation8], %s738
          %s741 = ssub.s32 16, 16
          %742 = vsyncadd %s737, %s741
          %s743 = smul.addr %s48, 4
          %s744 = sadd.s32 %s49, %s743
          %s745 = smul.addr %s744, 16
          %s746 = scalar_lea.hbm %s10, %s745
          %s748 = sshll.u32 %s739, 4
          %s749 = int_to_ptr.vmem [resolvable:$true] %s748
          %751 = dma.hbm_to_vmem [thread:$0]  %s746, 16, %s749, %s737
        $region68: #{speaker_trm_forward.1} parent=23 // pred_fallthru
          _
        // Predicated region
        $region69: #{speaker_trm_forward.1} parent=23 // pred_check
          %p752 = pneg %p379
        $region70: #{speaker_trm_forward.1} parent=23 // pred_check_branch
          %754 = sbr.rel (%p752) target = $region72
        $region71: #{speaker_trm_forward.1} parent=23 // pred_region
          %p755 = scmp.lt.s32.totalorder %s48, 1
          %s756 = scalar_select %p755, %s48, 1
          %p757 = scmp.lt.s32.totalorder %s49, 3
          %s758 = scalar_select %p757, %s49, 3
          %s759 = smul.addr %s758, 8
          %s760 = smul.addr %s756, 32
          %s761 = sadd.s32 %s759, %s760
          %s762 = smul.addr %s761, 4
          %s763 = scalar_lea.vmem %s11, %s762
        $region72: #{speaker_trm_forward.1} parent=23 // pred_fallthru
          _
        // Predicated region
        $region73: #{speaker_trm_forward.1} parent=23 // pred_check
          %p764 = pneg %p407
        $region74: #{speaker_trm_forward.1} parent=23 // pred_check_branch
          %766 = sbr.rel (%p764) target = $region76
        $region75: #{speaker_trm_forward.1} parent=23 // pred_region
          %s767 = sand.u32 %s40, 1
          %s768 = scalar_lea.sflag [#allocation10], %s767
          %s769 = sand.u32 %s397, 1
          %s770 = scalar_lea.vmem [#allocation9], %s769
          %s772 = ssub.s32 16, 16
          %773 = vsyncadd %s768, %s772
          %s774 = smul.addr %s48, 4
          %s775 = sadd.s32 %s49, %s774
          %s776 = smul.addr %s775, 16
          %s777 = scalar_lea.hbm %s12, %s776
          %s779 = sshll.u32 %s770, 4
          %s780 = int_to_ptr.vmem [resolvable:$true] %s779
          %782 = dma.hbm_to_vmem [thread:$0]  %s777, 16, %s780, %s768
        $region76: #{speaker_trm_forward.1} parent=23 // pred_fallthru
          _
        // Predicated region
        $region77: #{speaker_trm_forward.1} parent=23 // pred_check
          %p783 = pneg %p435
        $region78: #{speaker_trm_forward.1} parent=23 // pred_check_branch
          %785 = sbr.rel (%p783) target = $region80
        $region79: #{speaker_trm_forward.1} parent=23 // pred_region
          %s786 = sand.u32 %s40, 1
          %s787 = scalar_lea.sflag [#allocation10], %s786
          %s788 = sand.u32 %s425, 1
          %s789 = scalar_lea.vmem [#allocation11], %s788
          %s791 = ssub.s32 16, 16
          %792 = vsyncadd %s787, %s791
          %s793 = smul.addr %s48, 4
          %s794 = sadd.s32 %s49, %s793
          %s795 = smul.addr %s794, 16
          %s796 = scalar_lea.hbm %s13, %s795
          %s798 = sshll.u32 %s789, 4
          %s799 = int_to_ptr.vmem [resolvable:$true] %s798
          %801 = dma.hbm_to_vmem [thread:$0]  %s796, 16, %s799, %s787
        $region80: #{speaker_trm_forward.1} parent=23 // pred_fallthru
          _
        // Predicated region
        $region81: #{speaker_trm_forward.1} parent=23 // pred_check
          %p802 = pneg %p463
        $region82: #{speaker_trm_forward.1} parent=23 // pred_check_branch
          %804 = sbr.rel (%p802) target = $region84
        $region83: #{speaker_trm_forward.1} parent=23 // pred_region
          %s805 = sand.u32 %s40, 1
          %s806 = scalar_lea.sflag [#allocation13], %s805
          %s807 = sand.u32 %s453, 1
          %s808 = scalar_lea.vmem [#allocation12], %s807
          %s810 = ssub.s32 16, 16
          %811 = vsyncadd %s806, %s810
          %s812 = smul.addr %s48, 4
          %s813 = sadd.s32 %s49, %s812
          %s814 = smul.addr %s813, 16
          %s815 = scalar_lea.hbm %s14, %s814
          %s817 = sshll.u32 %s808, 4
          %s818 = int_to_ptr.vmem [resolvable:$true] %s817
          %820 = dma.hbm_to_vmem [thread:$0]  %s815, 16, %s818, %s806
        $region84: #{speaker_trm_forward.1} parent=23 // pred_fallthru
          _
        // Predicated region
        $region85: #{speaker_trm_forward.1} parent=23 // pred_check
          %p821 = pneg %p491
        $region86: #{speaker_trm_forward.1} parent=23 // pred_check_branch
          %823 = sbr.rel (%p821) target = $region88
        $region87: #{speaker_trm_forward.1} parent=23 // pred_region
          %s824 = sand.u32 %s40, 1
          %s825 = scalar_lea.sflag [#allocation13], %s824
          %s826 = sand.u32 %s481, 1
          %s827 = scalar_lea.vmem [#allocation14], %s826
          %s829 = ssub.s32 16, 16
          %830 = vsyncadd %s825, %s829
          %s831 = smul.addr %s48, 4
          %s832 = sadd.s32 %s49, %s831
          %s833 = smul.addr %s832, 16
          %s834 = scalar_lea.hbm %s15, %s833
          %s836 = sshll.u32 %s827, 4
          %s837 = int_to_ptr.vmem [resolvable:$true] %s836
          %839 = dma.hbm_to_vmem [thread:$0]  %s834, 16, %s837, %s825
        $region88: #{speaker_trm_forward.1} parent=23 // pred_fallthru
          _
        // Predicated region
        $region89: #{speaker_trm_forward.1} parent=23 // pred_check
          %p840 = pneg %p519
        $region90: #{speaker_trm_forward.1} parent=23 // pred_check_branch
          %842 = sbr.rel (%p840) target = $region92
        $region91: #{speaker_trm_forward.1} parent=23 // pred_region
          %s843 = sand.u32 %s40, 1
          %s844 = scalar_lea.sflag [#allocation16], %s843
          %s845 = sand.u32 %s509, 1
          %s846 = scalar_lea.vmem [#allocation15], %s845
          %s848 = ssub.s32 16, 16
          %849 = vsyncadd %s844, %s848
          %s850 = smul.addr %s48, 4
          %s851 = sadd.s32 %s49, %s850
          %s852 = smul.addr %s851, 16
          %s853 = scalar_lea.hbm %s16, %s852
          %s855 = sshll.u32 %s846, 4
          %s856 = int_to_ptr.vmem [resolvable:$true] %s855
          %858 = dma.hbm_to_vmem [thread:$0]  %s853, 16, %s856, %s844
        $region92: #{speaker_trm_forward.1} parent=23 // pred_fallthru
          _
      $region24: #{speaker_trm_forward.1} parent=5 // pred_fallthru
        _
      %p859 = scmp.le.s32.totalorder 1, %s40
      %p860 = scmp.lt.s32.totalorder %s40, 17
      %p861 = pnand %p859, %p860
      %p862 = pneg %p861
      // Predicated region
      $region93: #{speaker_trm_forward.1} parent=5 // pred_check
        _
      $region94: #{speaker_trm_forward.1} parent=5 // pred_check_branch
        %864 = sbr.rel (%p861) target = $region96
      $region95: #{speaker_trm_forward.1} parent=5 // pred_region
        %s865 = ssub.s32 %s40, 1
        %s866 = sand.u32 %s232, 1
        %s867 = scalar_lea.sflag [#allocation5], %s866
        %s868 = sand.u32 %s232, 1
        %s869 = scalar_lea.vmem [#allocation4], %s868
        // Predicated region
        $region97: #{speaker_trm_forward.1} parent=95 // pred_check
          %p870 = pneg %p245
        $region98: #{speaker_trm_forward.1} parent=95 // pred_check_branch
          %872 = sbr.rel (%p870) target = $region100
        $region99: #{speaker_trm_forward.1} parent=95 // pred_region
          %873 = dma.done %s867, 16
        $region100: #{speaker_trm_forward.1} parent=95 // pred_fallthru
          _
        %s874 = sand.u32 %s45, 1
        %s875 = scalar_lea.sflag [#allocation7], %s874
        %s876 = sand.u32 %s288, 1
        %s877 = scalar_lea.vmem [#allocation6], %s876
        // Predicated region
        $region101: #{speaker_trm_forward.1} parent=95 // pred_check
          %p878 = pneg %p301
        $region102: #{speaker_trm_forward.1} parent=95 // pred_check_branch
          %880 = sbr.rel (%p878) target = $region104
        $region103: #{speaker_trm_forward.1} parent=95 // pred_region
          %881 = dma.done %s875, 16
        $region104: #{speaker_trm_forward.1} parent=95 // pred_fallthru
          _
        %s882 = sand.u32 %s45, 1
        %s883 = scalar_lea.sflag [#allocation7], %s882
        %s884 = sand.u32 %s344, 1
        %s885 = scalar_lea.vmem [#allocation8], %s884
        // Predicated region
        $region105: #{speaker_trm_forward.1} parent=95 // pred_check
          %p886 = pneg %p357
        $region106: #{speaker_trm_forward.1} parent=95 // pred_check_branch
          %888 = sbr.rel (%p886) target = $region108
        $region107: #{speaker_trm_forward.1} parent=95 // pred_region
          %889 = dma.done %s883, 16
        $region108: #{speaker_trm_forward.1} parent=95 // pred_fallthru
          _
        %s890 = sand.u32 %s45, 1
        %s891 = scalar_lea.sflag [#allocation10], %s890
        %s892 = sand.u32 %s400, 1
        %s893 = scalar_lea.vmem [#allocation9], %s892
        // Predicated region
        $region109: #{speaker_trm_forward.1} parent=95 // pred_check
          %p894 = pneg %p413
        $region110: #{speaker_trm_forward.1} parent=95 // pred_check_branch
          %896 = sbr.rel (%p894) target = $region112
        $region111: #{speaker_trm_forward.1} parent=95 // pred_region
          %897 = dma.done %s891, 16
        $region112: #{speaker_trm_forward.1} parent=95 // pred_fallthru
          _
        %s898 = sand.u32 %s45, 1
        %s899 = scalar_lea.sflag [#allocation10], %s898
        %s900 = sand.u32 %s428, 1
        %s901 = scalar_lea.vmem [#allocation11], %s900
        // Predicated region
        $region113: #{speaker_trm_forward.1} parent=95 // pred_check
          %p902 = pneg %p441
        $region114: #{speaker_trm_forward.1} parent=95 // pred_check_branch
          %904 = sbr.rel (%p902) target = $region116
        $region115: #{speaker_trm_forward.1} parent=95 // pred_region
          %905 = dma.done %s899, 16
        $region116: #{speaker_trm_forward.1} parent=95 // pred_fallthru
          _
        %s906 = sand.u32 %s45, 1
        %s907 = scalar_lea.sflag [#allocation13], %s906
        %s908 = sand.u32 %s456, 1
        %s909 = scalar_lea.vmem [#allocation12], %s908
        // Predicated region
        $region117: #{speaker_trm_forward.1} parent=95 // pred_check
          %p910 = pneg %p469
        $region118: #{speaker_trm_forward.1} parent=95 // pred_check_branch
          %912 = sbr.rel (%p910) target = $region120
        $region119: #{speaker_trm_forward.1} parent=95 // pred_region
          %913 = dma.done %s907, 16
        $region120: #{speaker_trm_forward.1} parent=95 // pred_fallthru
          _
        %s914 = sand.u32 %s45, 1
        %s915 = scalar_lea.sflag [#allocation13], %s914
        %s916 = sand.u32 %s484, 1
        %s917 = scalar_lea.vmem [#allocation14], %s916
        // Predicated region
        $region121: #{speaker_trm_forward.1} parent=95 // pred_check
          %p918 = pneg %p497
        $region122: #{speaker_trm_forward.1} parent=95 // pred_check_branch
          %920 = sbr.rel (%p918) target = $region124
        $region123: #{speaker_trm_forward.1} parent=95 // pred_region
          %921 = dma.done %s915, 16
        $region124: #{speaker_trm_forward.1} parent=95 // pred_fallthru
          _
        %s922 = sand.u32 %s45, 1
        %s923 = scalar_lea.sflag [#allocation16], %s922
        %s924 = sand.u32 %s512, 1
        %s925 = scalar_lea.vmem [#allocation15], %s924
        // Predicated region
        $region125: #{speaker_trm_forward.1} parent=95 // pred_check
          %p926 = pneg %p525
        $region126: #{speaker_trm_forward.1} parent=95 // pred_check_branch
          %928 = sbr.rel (%p926) target = $region128
        $region127: #{speaker_trm_forward.1} parent=95 // pred_region
          %929 = dma.done %s923, 16
        $region128: #{speaker_trm_forward.1} parent=95 // pred_fallthru
          _
        // Predicated region
        $region129: #{speaker_trm_forward.1} parent=95 // pred_check
          %p930 = pneg %p567
        $region130: #{speaker_trm_forward.1} parent=95 // pred_check_branch
          %932 = sbr.rel (%p930) target = $region132
        $region131: #{speaker_trm_forward.1} parent=95 // pred_region
          %933 = dma.done [#allocation16], 16
        $region132: #{speaker_trm_forward.1} parent=95 // pred_fallthru
          _
        %p934 = scmp.lt.s32.totalorder %s50, 1
        %s935 = scalar_select %p934, %s50, 1
        %s936 = smul.addr %s935, 8
        %s937 = scalar_lea.vmem %s0, %s936
        %p938 = pneg %p85
        %p939 = pneg %p82
        %p940 = scmp.lt.s32.totalorder %s50, 1
        %s941 = scalar_select %p940, %s50, 1
        %s942 = smul.addr %s941, 8
        %s943 = scalar_lea.vmem %s1, %s942
        %p944 = pneg %p111
        %p945 = pneg %p108
        %p946 = scmp.lt.s32.totalorder %s50, 1
        %s947 = scalar_select %p946, %s50, 1
        %s948 = scalar_lea.vmem %s2, %s947
        %p949 = pneg %p137
        %p950 = pneg %p134
        %p951 = scmp.lt.s32.totalorder %s50, 1
        %s952 = scalar_select %p951, %s50, 1
        %s953 = smul.addr %s952, 8
        %s954 = scalar_lea.vmem %s3, %s953
        %p955 = pneg %p163
        %p956 = pneg %p160
        %p957 = scmp.lt.s32.totalorder %s50, 1
        %s958 = scalar_select %p957, %s50, 1
        %s959 = scalar_lea.vmem %s4, %s958
        %p960 = pneg %p189
        %p961 = pneg %p186
        %p962 = scmp.lt.s32.totalorder %s51, 1
        %s963 = scalar_select %p962, %s51, 1
        %p964 = scmp.lt.s32.totalorder %s52, 3
        %s965 = scalar_select %p964, %s52, 3
        %s966 = smul.addr %s965, 4
        %s967 = smul.addr %s963, 16
        %s968 = sadd.s32 %s966, %s967
        %s969 = smul.addr %s968, 4
        %s970 = scalar_lea.vmem %s5, %s969
        %p971 = pneg %p217
        %p972 = pneg %p214
        %s973 = sand.u32 %s232, 1
        %s974 = scalar_lea.sflag [#allocation5], %s973
        %s975 = sand.u32 %s232, 1
        %s976 = scalar_lea.vmem [#allocation4], %s975
        %p977 = pneg %p245
        %p978 = pneg %p242
        %p979 = scmp.lt.s32.totalorder %s51, 1
        %s980 = scalar_select %p979, %s51, 1
        %p981 = scmp.lt.s32.totalorder %s52, 3
        %s982 = scalar_select %p981, %s52, 3
        %s983 = smul.addr %s982, 4
        %s984 = smul.addr %s980, 16
        %s985 = sadd.s32 %s983, %s984
        %s986 = smul.addr %s985, 4
        %s987 = scalar_lea.vmem %s7, %s986
        %p988 = pneg %p273
        %p989 = pneg %p270
        %s990 = sand.u32 %s45, 1
        %s991 = scalar_lea.sflag [#allocation7], %s990
        %s992 = sand.u32 %s288, 1
        %s993 = scalar_lea.vmem [#allocation6], %s992
        %p994 = pneg %p301
        %p995 = pneg %p298
        %p996 = scmp.lt.s32.totalorder %s51, 1
        %s997 = scalar_select %p996, %s51, 1
        %p998 = scmp.lt.s32.totalorder %s52, 3
        %s999 = scalar_select %p998, %s52, 3
        %s1000 = smul.addr %s999, 4
        %s1001 = smul.addr %s997, 16
        %s1002 = sadd.s32 %s1000, %s1001
        %s1003 = smul.addr %s1002, 4
        %s1004 = scalar_lea.vmem %s9, %s1003
        %p1005 = pneg %p329
        %p1006 = pneg %p326
        %s1007 = sand.u32 %s45, 1
        %s1008 = scalar_lea.sflag [#allocation7], %s1007
        %s1009 = sand.u32 %s344, 1
        %s1010 = scalar_lea.vmem [#allocation8], %s1009
        %p1011 = pneg %p357
        %p1012 = pneg %p354
        %p1013 = scmp.lt.s32.totalorder %s51, 1
        %s1014 = scalar_select %p1013, %s51, 1
        %p1015 = scmp.lt.s32.totalorder %s52, 3
        %s1016 = scalar_select %p1015, %s52, 3
        %s1017 = smul.addr %s1016, 8
        %s1018 = smul.addr %s1014, 32
        %s1019 = sadd.s32 %s1017, %s1018
        %s1020 = smul.addr %s1019, 4
        %s1021 = scalar_lea.vmem %s11, %s1020
        %p1022 = pneg %p385
        %p1023 = pneg %p382
        %s1024 = sand.u32 %s45, 1
        %s1025 = scalar_lea.sflag [#allocation10], %s1024
        %s1026 = sand.u32 %s400, 1
        %s1027 = scalar_lea.vmem [#allocation9], %s1026
        %p1028 = pneg %p413
        %p1029 = pneg %p410
        %s1030 = sand.u32 %s45, 1
        %s1031 = scalar_lea.sflag [#allocation10], %s1030
        %s1032 = sand.u32 %s428, 1
        %s1033 = scalar_lea.vmem [#allocation11], %s1032
        %p1034 = pneg %p441
        %p1035 = pneg %p438
        %s1036 = sand.u32 %s45, 1
        %s1037 = scalar_lea.sflag [#allocation13], %s1036
        %s1038 = sand.u32 %s456, 1
        %s1039 = scalar_lea.vmem [#allocation12], %s1038
        %p1040 = pneg %p469
        %p1041 = pneg %p466
        %s1042 = sand.u32 %s45, 1
        %s1043 = scalar_lea.sflag [#allocation13], %s1042
        %s1044 = sand.u32 %s484, 1
        %s1045 = scalar_lea.vmem [#allocation14], %s1044
        %p1046 = pneg %p497
        %p1047 = pneg %p494
        %s1048 = sand.u32 %s45, 1
        %s1049 = scalar_lea.sflag [#allocation16], %s1048
        %s1050 = sand.u32 %s512, 1
        %s1051 = scalar_lea.vmem [#allocation15], %s1050
        %p1052 = pneg %p525
        %p1053 = pneg %p522
        %p1054 = pneg %p546
        %p1055 = pneg %p543
        %p1056 = pneg %p567
        %p1057 = pneg %p564
        %p1058 = pneg %p593
        %p1059 = pneg %p590
        %p1060 = scmp.lt.s32.totalorder %s50, 1
        %s1061 = scalar_select %p1060, %s50, 1
        %s1062 = smul.addr %s1061, 8
        %s1063 = scalar_lea.vmem %s19, %s1062
        %p1064 = scmp.lt.s32.totalorder %s50, 1
        %s1065 = scalar_select %p1064, %s50, 1
        %s1066 = smul.addr %s1065, 8
        %s1067 = scalar_lea.vmem %s0, %s1066
        %p1068 = scmp.lt.s32.totalorder %s50, 1
        %s1069 = scalar_select %p1068, %s50, 1
        %s1070 = smul.addr %s1069, 8
        %s1071 = scalar_lea.vmem %s1, %s1070
        %p1072 = scmp.lt.s32.totalorder %s50, 1
        %s1073 = scalar_select %p1072, %s50, 1
        %s1074 = scalar_lea.vmem %s2, %s1073
        %p1075 = scmp.lt.s32.totalorder %s50, 1
        %s1076 = scalar_select %p1075, %s50, 1
        %s1077 = smul.addr %s1076, 8
        %s1078 = scalar_lea.vmem %s3, %s1077
        %p1079 = scmp.lt.s32.totalorder %s50, 1
        %s1080 = scalar_select %p1079, %s50, 1
        %s1081 = scalar_lea.vmem %s4, %s1080
        %p1082 = scmp.lt.s32.totalorder %s51, 1
        %s1083 = scalar_select %p1082, %s51, 1
        %p1084 = scmp.lt.s32.totalorder %s52, 3
        %s1085 = scalar_select %p1084, %s52, 3
        %s1086 = smul.addr %s1085, 4
        %s1087 = smul.addr %s1083, 16
        %s1088 = sadd.s32 %s1086, %s1087
        %s1089 = smul.addr %s1088, 4
        %s1090 = scalar_lea.vmem %s5, %s1089
        %p1091 = scmp.lt.s32.totalorder %s51, 1
        %s1092 = scalar_select %p1091, %s51, 1
        %p1093 = scmp.lt.s32.totalorder %s52, 3
        %s1094 = scalar_select %p1093, %s52, 3
        %s1095 = smul.addr %s1094, 4
        %s1096 = smul.addr %s1092, 16
        %s1097 = sadd.s32 %s1095, %s1096
        %s1098 = smul.addr %s1097, 4
        %s1099 = scalar_lea.vmem %s7, %s1098
        %p1100 = scmp.lt.s32.totalorder %s51, 1
        %s1101 = scalar_select %p1100, %s51, 1
        %p1102 = scmp.lt.s32.totalorder %s52, 3
        %s1103 = scalar_select %p1102, %s52, 3
        %s1104 = smul.addr %s1103, 4
        %s1105 = smul.addr %s1101, 16
        %s1106 = sadd.s32 %s1104, %s1105
        %s1107 = smul.addr %s1106, 4
        %s1108 = scalar_lea.vmem %s9, %s1107
        %p1109 = scmp.lt.s32.totalorder %s51, 1
        %s1110 = scalar_select %p1109, %s51, 1
        %p1111 = scmp.lt.s32.totalorder %s52, 3
        %s1112 = scalar_select %p1111, %s52, 3
        %s1113 = smul.addr %s1112, 8
        %s1114 = smul.addr %s1110, 32
        %s1115 = sadd.s32 %s1113, %s1114
        %s1116 = smul.addr %s1115, 4
        %s1117 = scalar_lea.vmem %s11, %s1116
        %p1118 = scmp.lt.s32.totalorder %s50, 1
        %s1119 = scalar_select %p1118, %s50, 1
        %s1120 = smul.addr %s1119, 8
        %s1121 = scalar_lea.vmem %s19, %s1120
        %p1123 = scmp.eq.s32.totalorder %s51, 0
        %p1124 = scmp.eq.s32.totalorder %s52, 0
        %p1125 = pnand %p1123, %p1124
        %p1126 = pneg %p1125
        // Predicated region
        $region133: #{speaker_trm_forward.1} parent=95 // pred_check
          _
        $region134: #{speaker_trm_forward.1} parent=95 // pred_check_branch
          %1128 = sbr.rel (%p1125) target = $region136
        $region135: #{speaker_trm_forward.1} parent=95 // pred_region
          %v1129 = vld [vmem:[%s1067] sm:$0xff]
          %vm1130 = vcmask 261120
          %1131 = vst.msk [vmem:[#allocation2] sm:$0xff] %vm1130, %v1129
        $region136: #{speaker_trm_forward.1} parent=95 // pred_fallthru
          _
        // Predicated region
        $region137: #{speaker_trm_forward.1} parent=95 // pred_check
          %p1132 = pneg %p1124
        $region138: #{speaker_trm_forward.1} parent=95 // pred_check_branch
          %1134 = sbr.rel (%p1132) target = $region140
        $region139: #{speaker_trm_forward.1} parent=95 // pred_region
          %vm1135 = vcmask 261120
          %1136 = vst.msk [vmem:[#allocation3] sm:$0xff] %vm1135, 0.0
        $region140: #{speaker_trm_forward.1} parent=95 // pred_fallthru
          _
        %v1137 = vlaneseq
        %v1138 = vshrl.u32 %v1137, 7
        %v1139 = vlaneseq
        %v1140 = vand.u32 %v1139, 127
        %v1141 = vld [vmem:[%s1071] sm:$0xff]
        %v1142 = vld [vmem:[%s1074] sm:$0x1]
        %1144 = vset.pattern.permute.xlu0 0
        %1145 = vperm.xlu0 %1144, %v1141
        %v1146 = vpop.permute.xlu0 %1145
        %v1149 = vlaneseq
        %v1150 = vshrl.u32 %v1149, 7
        %v1151 = vsub.s32 0, %v1150
        %v1152 = vrot.slane %v1142, %v1151
        %v1154 = vsub.f32 %v1146, %v1152
        %s1155 = scalar_select %p1124, 1.0, 0.0
        %v1156 = vstv %s1155
        %v1157 = vmul.f32 %v1156, 0.0
        %v1158 = vadd.f32 %v1157, 0.0
        %vm1159 = vcmp.ne.f32.partialorder %v1154, 0.0
        %v1160 = vsel %vm1159, 1.0, 0.0
        %p1161 = scmp.eq.s32.totalorder %s52, 1
        %s1162 = scalar_select %p1161, 1.0, 0.0
        %v1163 = vstv %s1162
        %v1164 = vmul.f32 %v1163, %v1160
        %v1165 = vadd.f32 %v1158, %v1164
        %vm1166 = vcmp.eq.f32.partialorder %v1154, 0.0
        %vm1167 = vcmp.ne.s32.totalorder %v1138, %v1140
        %vm1168 = vmand %vm1166, %vm1167
        %v1169 = vsel %vm1168, 1.0, 0.0
        %p1170 = scmp.eq.s32.totalorder %s52, 2
        %s1171 = scalar_select %p1170, 1.0, 0.0
        %v1172 = vstv %s1171
        %v1173 = vmul.f32 %v1172, %v1169
        %v1174 = vadd.f32 %v1165, %v1173
        %v1175 = vsub.s32 %v1138, %v1140
        %vm1176 = vcmp.lt.s32.totalorder %v1175, 0
        %v1177 = vsub.s32 0, %v1175
        %v1178 = vsel %vm1176, %v1177, %v1175
        %vm1179 = vcmp.ge.s32.totalorder %v1178, 3
        %v1180 = vsel %vm1179, 1.0, 0.0
        %p1181 = scmp.eq.s32.totalorder %s52, 3
        %s1182 = scalar_select %p1181, 1.0, 0.0
        %v1183 = vstv %s1182
        %v1184 = vmul.f32 %v1183, %v1180
        %v1185 = vadd.f32 %v1174, %v1184
        %v1186 = vld [vmem:[%s1078] sm:$0xff]
        %v1187 = vld [vmem:[%s1081] sm:$0x1]
        %1189 = vset.pattern.permute.xlu0 0
        %1190 = vperm.xlu0 %1189, %v1186
        %v1191 = vpop.permute.xlu0 %1190
        %v1194 = vlaneseq
        %v1195 = vshrl.u32 %v1194, 7
        %v1196 = vsub.s32 0, %v1195
        %v1197 = vrot.slane %v1187, %v1196
        %v1199 = vmul.f32 %v1191, %v1197
        %v1200 = vsub.f32 1.0, %v1186
        %v1201 = vmax.f32 %v1185, %v1197
        %1203 = vset.pattern.permute.xlu0 0
        %1204 = vperm.xlu0 %1203, %v1200
        %v1205 = vpop.permute.xlu0 %1204
        %v1207 = vmul.f32 %v1205, %v1201
        %v1208 = vadd.f32 %v1199, %v1207
        %v1209 = vmul.f32 %v1208, -1e+09
        %v1210 = vld [vmem:[#allocation2] sm:$0xff]
        %v1211 = vpack.c.bf16 %v1210, %v1210
        %v1212 = vld [vmem:[%s1090] sm:$0xf]
        %v1213 = vld [vmem:[%s1090 + $0x4] sm:$0xf]
        %v1214 = vld [vmem:[%s1090 + $0x8] sm:$0xf]
        %v1215 = vld [vmem:[%s1090 + $0xc] sm:$0xf]
        %v1216 = vld [vmem:[%s869] sm:$0x1]
        %v1218 = vlaneseq
        %v1219 = vshrl.u32 %v1218, 7
        %v1220 = vsub.s32 0, %v1219
        %v1221 = vrot.slane %v1216, %v1220
        %v1227 = vunpack.c.l.b16 %v1212
        %v1228 = vunpack.c.l.b16 %v1213
        %v1229 = vunpack.c.l.b16 %v1214
        %v1230 = vunpack.c.l.b16 %v1215
        %v1231 = vpack.c.b16 %v1228, %v1227
        %v1232 = vpack.c.b16 %v1230, %v1229
        %vm1235 = vcmask 261120
        %v1237 = vsel %vm1235, %v1211, 0
        %1239 = vmatprep.subr.bf16.mxu0 0
        %1240 = vmatpush1.bf16.msra.mxu0 %v1231
        %1241 = vmatprep.subr.bf16.mxu0 0
        %1242 = vmatpush1.bf16.msra.mxu0 %v1232
        %1243 = vmatprep.subr.bf16.mxu0 0
        %1244 = vmatpush1.bf16.msra.mxu0 0
        %1245 = vmatprep.subr.bf16.mxu0 0
        %1246 = vmatpush1.bf16.msra.mxu0 0
        %1247 = vmatprep.subr.bf16.mxu0 0
        %1248 = vmatpush1.bf16.msra.mxu0 0
        %1249 = vmatprep.subr.bf16.mxu0 0
        %1250 = vmatpush1.bf16.msra.mxu0 0
        %1251 = vmatprep.subr.bf16.mxu0 0
        %1252 = vmatpush1.bf16.msra.mxu0 0
        %1253 = vmatprep.subr.bf16.mxu0 0
        %1254 = vmatpush1.bf16.msra.mxu0 0
        %1255 = vmatprep.subr.bf16.mxu0 0
        %1256 = vmatpush1.bf16.msra.mxu0 0
        %1257 = vmatprep.subr.bf16.mxu0 0
        %1258 = vmatpush1.bf16.msra.mxu0 0
        %1259 = vmatprep.subr.bf16.mxu0 0
        %1260 = vmatpush1.bf16.msra.mxu0 0
        %1261 = vmatprep.subr.bf16.mxu0 0
        %1262 = vmatpush1.bf16.msra.mxu0 0
        %1263 = vmatprep.subr.bf16.mxu0 0
        %1264 = vmatpush1.bf16.msra.mxu0 0
        %1265 = vmatprep.subr.bf16.mxu0 0
        %1266 = vmatpush1.bf16.msra.mxu0 0
        %1267 = vmatprep.subr.bf16.mxu0 0
        %1268 = vmatpush1.bf16.msra.mxu0 0
        %1269 = vmatprep.subr.bf16.mxu0 0
        %1270 = vmatpush1.bf16.msra.mxu0 0
        %1271 = vmatprep.mubr.bf16.mxu0 0
        %1272 = vmatmul.mubr.bf16.gmra.mrb[0].mxu0 %v1237
        %v1273 = vpop.f32.mrb[0].mxu0
        %v1274 = vadd.f32 %v1221, %v1273
        %v1275 = vpop.f32.mrb[0].mxu0
        %v1276 = vpop.f32.mrb[0].mxu0
        %v1277 = vpop.f32.mrb[0].mxu0
        %1278 = vdwg.mxu0
        %v1279 = vpack.c.bf16 %v1274, %v1274
        %1281 = vrot.lane.b32.xlu0 %v1279, 96
        %v1282 = vpop.permute.xlu0 %1281
        %vm1283 = vcmask 64512
        %v1285 = vsel %vm1283, %v1279, 0
        %v1288 = vsel %vm1283, %v1282, 0
        %1290 = vmatprep.subr.bf16.mxu0 0
        %1291 = vmatpush1.bf16.xpose.msra.mxu0 %v1288
        %1292 = vmatprep.subr.bf16.mxu0 0
        %1293 = vmatpush1.bf16.xpose.msra.mxu0 0
        %1294 = vmatprep.subr.bf16.mxu0 0
        %1295 = vmatpush1.bf16.xpose.msra.mxu0 0
        %1296 = vmatprep.subr.bf16.mxu0 0
        %1297 = vmatpush1.bf16.xpose.msra.mxu0 0
        %1298 = vmatprep.subr.bf16.mxu0 0
        %1299 = vmatpush1.bf16.xpose.msra.mxu0 0
        %1300 = vmatprep.subr.bf16.mxu0 0
        %1301 = vmatpush1.bf16.xpose.msra.mxu0 0
        %1302 = vmatprep.subr.bf16.mxu0 0
        %1303 = vmatpush1.bf16.xpose.msra.mxu0 0
        %1304 = vmatprep.subr.bf16.mxu0 0
        %1305 = vmatpush1.bf16.xpose.msra.mxu0 0
        %1306 = vmatprep.subr.bf16.mxu0 0
        %1307 = vmatpush1.bf16.xpose.msra.mxu0 0
        %1308 = vmatprep.subr.bf16.mxu0 0
        %1309 = vmatpush1.bf16.xpose.msra.mxu0 0
        %1310 = vmatprep.subr.bf16.mxu0 0
        %1311 = vmatpush1.bf16.xpose.msra.mxu0 0
        %1312 = vmatprep.subr.bf16.mxu0 0
        %1313 = vmatpush1.bf16.xpose.msra.mxu0 0
        %1314 = vmatprep.subr.bf16.mxu0 0
        %1315 = vmatpush1.bf16.xpose.msra.mxu0 0
        %1316 = vmatprep.subr.bf16.mxu0 0
        %1317 = vmatpush1.bf16.xpose.msra.mxu0 0
        %1318 = vmatprep.subr.bf16.mxu0 0
        %1319 = vmatpush1.bf16.xpose.msra.mxu0 0
        %1320 = vmatprep.subr.bf16.mxu0 0
        %1321 = vmatpush1.bf16.xpose.msra.mxu0 0
        %1322 = vmatprep.mubr.bf16.mxu0 0
        %1323 = vmatmul.mubr.bf16.gmra.mrb[0].mxu0 %v1285
        %v1324 = vpop.f32.mrb[0].mxu0
        %v1325 = vadd.f32 %v1209, %v1324
        %v1326 = vpop.f32.mrb[0].mxu0
        %v1327 = vpop.f32.mrb[0].mxu0
        %v1328 = vpop.f32.mrb[0].mxu0
        %1329 = vdwg.mxu0
        %v1330 = vsel %vm1283, %v1325, -inf
        %1331 = vmax.xlane.f32.xlu0 %v1330
        %v1332 = vpop.xlane.xlu0 %1331
        %v1333 = vsub.f32 %v1325, %v1332
        %v1334 = vmul.f32 %v1333, 1.442695
        %v1335 = vpow.pop %v1334
        %v1336 = vsel %vm1283, %v1335, 0.0
        %1337 = vadd.xlane.f32.xlu0 %v1336
        %v1338 = vpop.xlane.xlu0 %1337
        %v1339 = vrcp.pop %v1338
        %v1340 = vmul.f32 %v1335, %v1339
        %v1341 = vpack.c.bf16 %v1340, %v1340
        %1342 = vrot.lane.b32.xlu0 %v1279, 64
        %v1343 = vpop.permute.xlu0 %1342
        %v1345 = vsel %vm1283, %v1341, 0
        %vm1347 = vcmask 1043456
        %v1349 = vsel %vm1347, %v1343, 0
        %1351 = vmatprep.subr.bf16.mxu0 0
        %1352 = vmatpush1.bf16.msra.mxu0 %v1349
        %1353 = vmatprep.subr.bf16.mxu0 0
        %1354 = vmatpush1.bf16.msra.mxu0 0
        %1355 = vmatprep.subr.bf16.mxu0 0
        %1356 = vmatpush1.bf16.msra.mxu0 0
        %1357 = vmatprep.subr.bf16.mxu0 0
        %1358 = vmatpush1.bf16.msra.mxu0 0
        %1359 = vmatprep.subr.bf16.mxu0 0
        %1360 = vmatpush1.bf16.msra.mxu0 0
        %1361 = vmatprep.subr.bf16.mxu0 0
        %1362 = vmatpush1.bf16.msra.mxu0 0
        %1363 = vmatprep.subr.bf16.mxu0 0
        %1364 = vmatpush1.bf16.msra.mxu0 0
        %1365 = vmatprep.subr.bf16.mxu0 0
        %1366 = vmatpush1.bf16.msra.mxu0 0
        %1367 = vmatprep.subr.bf16.mxu0 0
        %1368 = vmatpush1.bf16.msra.mxu0 0
        %1369 = vmatprep.subr.bf16.mxu0 0
        %1370 = vmatpush1.bf16.msra.mxu0 0
        %1371 = vmatprep.subr.bf16.mxu0 0
        %1372 = vmatpush1.bf16.msra.mxu0 0
        %1373 = vmatprep.subr.bf16.mxu0 0
        %1374 = vmatpush1.bf16.msra.mxu0 0
        %1375 = vmatprep.subr.bf16.mxu0 0
        %1376 = vmatpush1.bf16.msra.mxu0 0
        %1377 = vmatprep.subr.bf16.mxu0 0
        %1378 = vmatpush1.bf16.msra.mxu0 0
        %1379 = vmatprep.subr.bf16.mxu0 0
        %1380 = vmatpush1.bf16.msra.mxu0 0
        %1381 = vmatprep.subr.bf16.mxu0 0
        %1382 = vmatpush1.bf16.msra.mxu0 0
        %1383 = vmatprep.mubr.bf16.mxu0 0
        %1384 = vmatmul.mubr.bf16.gmra.mrb[0].mxu0 %v1345
        %v1385 = vpop.f32.mrb[0].mxu0
        %v1386 = vadd.f32 0.0, %v1385
        %v1387 = vpop.f32.mrb[0].mxu0
        %v1388 = vpop.f32.mrb[0].mxu0
        %v1389 = vpop.f32.mrb[0].mxu0
        %1390 = vdwg.mxu0
        %1391 = vrot.lane.b32.xlu0 %v1279, 120
        %v1392 = vpop.permute.xlu0 %1391
        %1393 = vrot.lane.b32.xlu0 %v1279, 88
        %v1394 = vpop.permute.xlu0 %1393
        %v1396 = vsel %vm1283, %v1392, 0
        %v1399 = vsel %vm1283, %v1394, 0
        %1401 = vmatprep.subr.bf16.mxu0 0
        %1402 = vmatpush1.bf16.xpose.msra.mxu0 %v1399
        %1403 = vmatprep.subr.bf16.mxu0 0
        %1404 = vmatpush1.bf16.xpose.msra.mxu0 0
        %1405 = vmatprep.subr.bf16.mxu0 0
        %1406 = vmatpush1.bf16.xpose.msra.mxu0 0
        %1407 = vmatprep.subr.bf16.mxu0 0
        %1408 = vmatpush1.bf16.xpose.msra.mxu0 0
        %1409 = vmatprep.subr.bf16.mxu0 0
        %1410 = vmatpush1.bf16.xpose.msra.mxu0 0
        %1411 = vmatprep.subr.bf16.mxu0 0
        %1412 = vmatpush1.bf16.xpose.msra.mxu0 0
        %1413 = vmatprep.subr.bf16.mxu0 0
        %1414 = vmatpush1.bf16.xpose.msra.mxu0 0
        %1415 = vmatprep.subr.bf16.mxu0 0
        %1416 = vmatpush1.bf16.xpose.msra.mxu0 0
        %1417 = vmatprep.subr.bf16.mxu0 0
        %1418 = vmatpush1.bf16.xpose.msra.mxu0 0
        %1419 = vmatprep.subr.bf16.mxu0 0
        %1420 = vmatpush1.bf16.xpose.msra.mxu0 0
        %1421 = vmatprep.subr.bf16.mxu0 0
        %1422 = vmatpush1.bf16.xpose.msra.mxu0 0
        %1423 = vmatprep.subr.bf16.mxu0 0
        %1424 = vmatpush1.bf16.xpose.msra.mxu0 0
        %1425 = vmatprep.subr.bf16.mxu0 0
        %1426 = vmatpush1.bf16.xpose.msra.mxu0 0
        %1427 = vmatprep.subr.bf16.mxu0 0
        %1428 = vmatpush1.bf16.xpose.msra.mxu0 0
        %1429 = vmatprep.subr.bf16.mxu0 0
        %1430 = vmatpush1.bf16.xpose.msra.mxu0 0
        %1431 = vmatprep.subr.bf16.mxu0 0
        %1432 = vmatpush1.bf16.xpose.msra.mxu0 0
        %1433 = vmatprep.mubr.bf16.mxu0 0
        %1434 = vmatmul.mubr.bf16.gmra.mrb[0].mxu0 %v1396
        %v1435 = vpop.f32.mrb[0].mxu0
        %v1436 = vadd.f32 %v1209, %v1435
        %v1437 = vpop.f32.mrb[0].mxu0
        %v1438 = vpop.f32.mrb[0].mxu0
        %v1439 = vpop.f32.mrb[0].mxu0
        %1440 = vdwg.mxu0
        %v1441 = vsel %vm1283, %v1436, -inf
        %1442 = vmax.xlane.f32.xlu0 %v1441
        %v1443 = vpop.xlane.xlu0 %1442
        %v1444 = vsub.f32 %v1436, %v1443
        %v1445 = vmul.f32 %v1444, 1.442695
        %v1446 = vpow.pop %v1445
        %v1447 = vsel %vm1283, %v1446, 0.0
        %1448 = vadd.xlane.f32.xlu0 %v1447
        %v1449 = vpop.xlane.xlu0 %1448
        %v1450 = vrcp.pop %v1449
        %v1451 = vmul.f32 %v1446, %v1450
        %v1452 = vpack.c.bf16 %v1451, %v1451
        %1453 = vrot.lane.b32.xlu0 %v1279, 56
        %v1454 = vpop.permute.xlu0 %1453
        %v1456 = vsel %vm1283, %v1452, 0
        %v1459 = vsel %vm1347, %v1454, 0
        %1461 = vmatprep.subr.bf16.mxu0 0
        %1462 = vmatpush1.bf16.msra.mxu0 %v1459
        %1463 = vmatprep.subr.bf16.mxu0 0
        %1464 = vmatpush1.bf16.msra.mxu0 0
        %1465 = vmatprep.subr.bf16.mxu0 0
        %1466 = vmatpush1.bf16.msra.mxu0 0
        %1467 = vmatprep.subr.bf16.mxu0 0
        %1468 = vmatpush1.bf16.msra.mxu0 0
        %1469 = vmatprep.subr.bf16.mxu0 0
        %1470 = vmatpush1.bf16.msra.mxu0 0
        %1471 = vmatprep.subr.bf16.mxu0 0
        %1472 = vmatpush1.bf16.msra.mxu0 0
        %1473 = vmatprep.subr.bf16.mxu0 0
        %1474 = vmatpush1.bf16.msra.mxu0 0
        %1475 = vmatprep.subr.bf16.mxu0 0
        %1476 = vmatpush1.bf16.msra.mxu0 0
        %1477 = vmatprep.subr.bf16.mxu0 0
        %1478 = vmatpush1.bf16.msra.mxu0 0
        %1479 = vmatprep.subr.bf16.mxu0 0
        %1480 = vmatpush1.bf16.msra.mxu0 0
        %1481 = vmatprep.subr.bf16.mxu0 0
        %1482 = vmatpush1.bf16.msra.mxu0 0
        %1483 = vmatprep.subr.bf16.mxu0 0
        %1484 = vmatpush1.bf16.msra.mxu0 0
        %1485 = vmatprep.subr.bf16.mxu0 0
        %1486 = vmatpush1.bf16.msra.mxu0 0
        %1487 = vmatprep.subr.bf16.mxu0 0
        %1488 = vmatpush1.bf16.msra.mxu0 0
        %1489 = vmatprep.subr.bf16.mxu0 0
        %1490 = vmatpush1.bf16.msra.mxu0 0
        %1491 = vmatprep.subr.bf16.mxu0 0
        %1492 = vmatpush1.bf16.msra.mxu0 0
        %1493 = vmatprep.mubr.bf16.mxu0 0
        %1494 = vmatmul.mubr.bf16.gmra.mrb[0].mxu0 %v1456
        %v1495 = vpop.f32.mrb[0].mxu0
        %v1496 = vadd.f32 0.0, %v1495
        %v1497 = vpop.f32.mrb[0].mxu0
        %v1498 = vpop.f32.mrb[0].mxu0
        %v1499 = vpop.f32.mrb[0].mxu0
        %1500 = vdwg.mxu0
        %1501 = vrot.lane.b32.xlu0 %v1279, 112
        %v1502 = vpop.permute.xlu0 %1501
        %1503 = vrot.lane.b32.xlu0 %v1279, 80
        %v1504 = vpop.permute.xlu0 %1503
        %v1506 = vsel %vm1283, %v1502, 0
        %v1509 = vsel %vm1283, %v1504, 0
        %1511 = vmatprep.subr.bf16.mxu0 0
        %1512 = vmatpush1.bf16.xpose.msra.mxu0 %v1509
        %1513 = vmatprep.subr.bf16.mxu0 0
        %1514 = vmatpush1.bf16.xpose.msra.mxu0 0
        %1515 = vmatprep.subr.bf16.mxu0 0
        %1516 = vmatpush1.bf16.xpose.msra.mxu0 0
        %1517 = vmatprep.subr.bf16.mxu0 0
        %1518 = vmatpush1.bf16.xpose.msra.mxu0 0
        %1519 = vmatprep.subr.bf16.mxu0 0
        %1520 = vmatpush1.bf16.xpose.msra.mxu0 0
        %1521 = vmatprep.subr.bf16.mxu0 0
        %1522 = vmatpush1.bf16.xpose.msra.mxu0 0
        %1523 = vmatprep.subr.bf16.mxu0 0
        %1524 = vmatpush1.bf16.xpose.msra.mxu0 0
        %1525 = vmatprep.subr.bf16.mxu0 0
        %1526 = vmatpush1.bf16.xpose.msra.mxu0 0
        %1527 = vmatprep.subr.bf16.mxu0 0
        %1528 = vmatpush1.bf16.xpose.msra.mxu0 0
        %1529 = vmatprep.subr.bf16.mxu0 0
        %1530 = vmatpush1.bf16.xpose.msra.mxu0 0
        %1531 = vmatprep.subr.bf16.mxu0 0
        %1532 = vmatpush1.bf16.xpose.msra.mxu0 0
        %1533 = vmatprep.subr.bf16.mxu0 0
        %1534 = vmatpush1.bf16.xpose.msra.mxu0 0
        %1535 = vmatprep.subr.bf16.mxu0 0
        %1536 = vmatpush1.bf16.xpose.msra.mxu0 0
        %1537 = vmatprep.subr.bf16.mxu0 0
        %1538 = vmatpush1.bf16.xpose.msra.mxu0 0
        %1539 = vmatprep.subr.bf16.mxu0 0
        %1540 = vmatpush1.bf16.xpose.msra.mxu0 0
        %1541 = vmatprep.subr.bf16.mxu0 0
        %1542 = vmatpush1.bf16.xpose.msra.mxu0 0
        %1543 = vmatprep.mubr.bf16.mxu0 0
        %1544 = vmatmul.mubr.bf16.gmra.mrb[0].mxu0 %v1506
        %v1545 = vpop.f32.mrb[0].mxu0
        %v1546 = vadd.f32 %v1209, %v1545
        %v1547 = vpop.f32.mrb[0].mxu0
        %v1548 = vpop.f32.mrb[0].mxu0
        %v1549 = vpop.f32.mrb[0].mxu0
        %1550 = vdwg.mxu0
        %v1551 = vsel %vm1283, %v1546, -inf
        %1552 = vmax.xlane.f32.xlu0 %v1551
        %v1553 = vpop.xlane.xlu0 %1552
        %v1554 = vsub.f32 %v1546, %v1553
        %v1555 = vmul.f32 %v1554, 1.442695
        %v1556 = vpow.pop %v1555
        %v1557 = vsel %vm1283, %v1556, 0.0
        %1558 = vadd.xlane.f32.xlu0 %v1557
        %v1559 = vpop.xlane.xlu0 %1558
        %v1560 = vrcp.pop %v1559
        %v1561 = vmul.f32 %v1556, %v1560
        %v1562 = vpack.c.bf16 %v1561, %v1561
        %1563 = vrot.lane.b32.xlu0 %v1279, 48
        %v1564 = vpop.permute.xlu0 %1563
        %v1566 = vsel %vm1283, %v1562, 0
        %v1569 = vsel %vm1347, %v1564, 0
        %1571 = vmatprep.subr.bf16.mxu0 0
        %1572 = vmatpush1.bf16.msra.mxu0 %v1569
        %1573 = vmatprep.subr.bf16.mxu0 0
        %1574 = vmatpush1.bf16.msra.mxu0 0
        %1575 = vmatprep.subr.bf16.mxu0 0
        %1576 = vmatpush1.bf16.msra.mxu0 0
        %1577 = vmatprep.subr.bf16.mxu0 0
        %1578 = vmatpush1.bf16.msra.mxu0 0
        %1579 = vmatprep.subr.bf16.mxu0 0
        %1580 = vmatpush1.bf16.msra.mxu0 0
        %1581 = vmatprep.subr.bf16.mxu0 0
        %1582 = vmatpush1.bf16.msra.mxu0 0
        %1583 = vmatprep.subr.bf16.mxu0 0
        %1584 = vmatpush1.bf16.msra.mxu0 0
        %1585 = vmatprep.subr.bf16.mxu0 0
        %1586 = vmatpush1.bf16.msra.mxu0 0
        %1587 = vmatprep.subr.bf16.mxu0 0
        %1588 = vmatpush1.bf16.msra.mxu0 0
        %1589 = vmatprep.subr.bf16.mxu0 0
        %1590 = vmatpush1.bf16.msra.mxu0 0
        %1591 = vmatprep.subr.bf16.mxu0 0
        %1592 = vmatpush1.bf16.msra.mxu0 0
        %1593 = vmatprep.subr.bf16.mxu0 0
        %1594 = vmatpush1.bf16.msra.mxu0 0
        %1595 = vmatprep.subr.bf16.mxu0 0
        %1596 = vmatpush1.bf16.msra.mxu0 0
        %1597 = vmatprep.subr.bf16.mxu0 0
        %1598 = vmatpush1.bf16.msra.mxu0 0
        %1599 = vmatprep.subr.bf16.mxu0 0
        %1600 = vmatpush1.bf16.msra.mxu0 0
        %1601 = vmatprep.subr.bf16.mxu0 0
        %1602 = vmatpush1.bf16.msra.mxu0 0
        %1603 = vmatprep.mubr.bf16.mxu0 0
        %1604 = vmatmul.mubr.bf16.gmra.mrb[0].mxu0 %v1566
        %v1605 = vpop.f32.mrb[0].mxu0
        %v1606 = vadd.f32 0.0, %v1605
        %v1607 = vpop.f32.mrb[0].mxu0
        %v1608 = vpop.f32.mrb[0].mxu0
        %v1609 = vpop.f32.mrb[0].mxu0
        %1610 = vdwg.mxu0
        %1611 = vrot.lane.b32.xlu0 %v1279, 104
        %v1612 = vpop.permute.xlu0 %1611
        %1613 = vrot.lane.b32.xlu0 %v1279, 72
        %v1614 = vpop.permute.xlu0 %1613
        %v1616 = vsel %vm1283, %v1612, 0
        %v1619 = vsel %vm1283, %v1614, 0
        %1621 = vmatprep.subr.bf16.mxu0 0
        %1622 = vmatpush1.bf16.xpose.msra.mxu0 %v1619
        %1623 = vmatprep.subr.bf16.mxu0 0
        %1624 = vmatpush1.bf16.xpose.msra.mxu0 0
        %1625 = vmatprep.subr.bf16.mxu0 0
        %1626 = vmatpush1.bf16.xpose.msra.mxu0 0
        %1627 = vmatprep.subr.bf16.mxu0 0
        %1628 = vmatpush1.bf16.xpose.msra.mxu0 0
        %1629 = vmatprep.subr.bf16.mxu0 0
        %1630 = vmatpush1.bf16.xpose.msra.mxu0 0
        %1631 = vmatprep.subr.bf16.mxu0 0
        %1632 = vmatpush1.bf16.xpose.msra.mxu0 0
        %1633 = vmatprep.subr.bf16.mxu0 0
        %1634 = vmatpush1.bf16.xpose.msra.mxu0 0
        %1635 = vmatprep.subr.bf16.mxu0 0
        %1636 = vmatpush1.bf16.xpose.msra.mxu0 0
        %1637 = vmatprep.subr.bf16.mxu0 0
        %1638 = vmatpush1.bf16.xpose.msra.mxu0 0
        %1639 = vmatprep.subr.bf16.mxu0 0
        %1640 = vmatpush1.bf16.xpose.msra.mxu0 0
        %1641 = vmatprep.subr.bf16.mxu0 0
        %1642 = vmatpush1.bf16.xpose.msra.mxu0 0
        %1643 = vmatprep.subr.bf16.mxu0 0
        %1644 = vmatpush1.bf16.xpose.msra.mxu0 0
        %1645 = vmatprep.subr.bf16.mxu0 0
        %1646 = vmatpush1.bf16.xpose.msra.mxu0 0
        %1647 = vmatprep.subr.bf16.mxu0 0
        %1648 = vmatpush1.bf16.xpose.msra.mxu0 0
        %1649 = vmatprep.subr.bf16.mxu0 0
        %1650 = vmatpush1.bf16.xpose.msra.mxu0 0
        %1651 = vmatprep.subr.bf16.mxu0 0
        %1652 = vmatpush1.bf16.xpose.msra.mxu0 0
        %1653 = vmatprep.mubr.bf16.mxu0 0
        %1654 = vmatmul.mubr.bf16.gmra.mrb[0].mxu0 %v1616
        %v1655 = vpop.f32.mrb[0].mxu0
        %v1656 = vadd.f32 %v1209, %v1655
        %v1657 = vpop.f32.mrb[0].mxu0
        %v1658 = vpop.f32.mrb[0].mxu0
        %v1659 = vpop.f32.mrb[0].mxu0
        %1660 = vdwg.mxu0
        %v1661 = vsel %vm1283, %v1656, -inf
        %1662 = vmax.xlane.f32.xlu0 %v1661
        %v1663 = vpop.xlane.xlu0 %1662
        %v1664 = vsub.f32 %v1656, %v1663
        %v1665 = vmul.f32 %v1664, 1.442695
        %v1666 = vpow.pop %v1665
        %v1667 = vsel %vm1283, %v1666, 0.0
        %1668 = vadd.xlane.f32.xlu0 %v1667
        %v1669 = vpop.xlane.xlu0 %1668
        %v1670 = vrcp.pop %v1669
        %v1671 = vmul.f32 %v1666, %v1670
        %v1672 = vpack.c.bf16 %v1671, %v1671
        %1673 = vrot.lane.b32.xlu0 %v1279, 40
        %v1674 = vpop.permute.xlu0 %1673
        %v1676 = vsel %vm1283, %v1672, 0
        %v1679 = vsel %vm1347, %v1674, 0
        %1681 = vmatprep.subr.bf16.mxu0 0
        %1682 = vmatpush1.bf16.msra.mxu0 %v1679
        %1683 = vmatprep.subr.bf16.mxu0 0
        %1684 = vmatpush1.bf16.msra.mxu0 0
        %1685 = vmatprep.subr.bf16.mxu0 0
        %1686 = vmatpush1.bf16.msra.mxu0 0
        %1687 = vmatprep.subr.bf16.mxu0 0
        %1688 = vmatpush1.bf16.msra.mxu0 0
        %1689 = vmatprep.subr.bf16.mxu0 0
        %1690 = vmatpush1.bf16.msra.mxu0 0
        %1691 = vmatprep.subr.bf16.mxu0 0
        %1692 = vmatpush1.bf16.msra.mxu0 0
        %1693 = vmatprep.subr.bf16.mxu0 0
        %1694 = vmatpush1.bf16.msra.mxu0 0
        %1695 = vmatprep.subr.bf16.mxu0 0
        %1696 = vmatpush1.bf16.msra.mxu0 0
        %1697 = vmatprep.subr.bf16.mxu0 0
        %1698 = vmatpush1.bf16.msra.mxu0 0
        %1699 = vmatprep.subr.bf16.mxu0 0
        %1700 = vmatpush1.bf16.msra.mxu0 0
        %1701 = vmatprep.subr.bf16.mxu0 0
        %1702 = vmatpush1.bf16.msra.mxu0 0
        %1703 = vmatprep.subr.bf16.mxu0 0
        %1704 = vmatpush1.bf16.msra.mxu0 0
        %1705 = vmatprep.subr.bf16.mxu0 0
        %1706 = vmatpush1.bf16.msra.mxu0 0
        %1707 = vmatprep.subr.bf16.mxu0 0
        %1708 = vmatpush1.bf16.msra.mxu0 0
        %1709 = vmatprep.subr.bf16.mxu0 0
        %1710 = vmatpush1.bf16.msra.mxu0 0
        %1711 = vmatprep.subr.bf16.mxu0 0
        %1712 = vmatpush1.bf16.msra.mxu0 0
        %1713 = vmatprep.mubr.bf16.mxu0 0
        %1714 = vmatmul.mubr.bf16.gmra.mrb[0].mxu0 %v1676
        %v1715 = vpop.f32.mrb[0].mxu0
        %v1716 = vadd.f32 0.0, %v1715
        %v1717 = vpop.f32.mrb[0].mxu0
        %v1718 = vpop.f32.mrb[0].mxu0
        %v1719 = vpop.f32.mrb[0].mxu0
        %1720 = vdwg.mxu0
        %1722 = vrot.lane.b32.xlu0 %v1496, 8
        %v1723 = vpop.permute.xlu0 %1722
        %1726 = vrot.lane.b32.xlu0 %v1606, 16
        %v1727 = vpop.permute.xlu0 %1726
        %1730 = vrot.lane.b32.xlu0 %v1716, 24
        %v1731 = vpop.permute.xlu0 %1730
        %v1733 = vsel %vm1283, %v1386, %v1723
        %vm1734 = vcmask 130048
        %v1735 = vsel %vm1734, %v1733, %v1727
        %vm1736 = vcmask 195584
        %v1737 = vsel %vm1736, %v1735, %v1731
        %v1738 = vpack.c.bf16 %v1737, %v1737
        %v1739 = vld [vmem:[%s1099] sm:$0xf]
        %v1740 = vld [vmem:[%s1099 + $0x4] sm:$0xf]
        %v1741 = vld [vmem:[%s1099 + $0x8] sm:$0xf]
        %v1742 = vld [vmem:[%s1099 + $0xc] sm:$0xf]
        %v1743 = vld [vmem:[%s877] sm:$0x1]
        %v1745 = vlaneseq
        %v1746 = vshrl.u32 %v1745, 7
        %v1747 = vsub.s32 0, %v1746
        %v1748 = vrot.slane %v1743, %v1747
        %v1754 = vunpack.c.l.b16 %v1739
        %v1755 = vunpack.c.l.b16 %v1740
        %v1756 = vunpack.c.l.b16 %v1741
        %v1757 = vunpack.c.l.b16 %v1742
        %v1758 = vpack.c.b16 %v1755, %v1754
        %v1759 = vpack.c.b16 %v1757, %v1756
        %v1763 = vsel %vm1235, %v1738, 0
        %1765 = vmatprep.subr.bf16.mxu0 0
        %1766 = vmatpush1.bf16.msra.mxu0 %v1758
        %1767 = vmatprep.subr.bf16.mxu0 0
        %1768 = vmatpush1.bf16.msra.mxu0 %v1759
        %1769 = vmatprep.subr.bf16.mxu0 0
        %1770 = vmatpush1.bf16.msra.mxu0 0
        %1771 = vmatprep.subr.bf16.mxu0 0
        %1772 = vmatpush1.bf16.msra.mxu0 0
        %1773 = vmatprep.subr.bf16.mxu0 0
        %1774 = vmatpush1.bf16.msra.mxu0 0
        %1775 = vmatprep.subr.bf16.mxu0 0
        %1776 = vmatpush1.bf16.msra.mxu0 0
        %1777 = vmatprep.subr.bf16.mxu0 0
        %1778 = vmatpush1.bf16.msra.mxu0 0
        %1779 = vmatprep.subr.bf16.mxu0 0
        %1780 = vmatpush1.bf16.msra.mxu0 0
        %1781 = vmatprep.subr.bf16.mxu0 0
        %1782 = vmatpush1.bf16.msra.mxu0 0
        %1783 = vmatprep.subr.bf16.mxu0 0
        %1784 = vmatpush1.bf16.msra.mxu0 0
        %1785 = vmatprep.subr.bf16.mxu0 0
        %1786 = vmatpush1.bf16.msra.mxu0 0
        %1787 = vmatprep.subr.bf16.mxu0 0
        %1788 = vmatpush1.bf16.msra.mxu0 0
        %1789 = vmatprep.subr.bf16.mxu0 0
        %1790 = vmatpush1.bf16.msra.mxu0 0
        %1791 = vmatprep.subr.bf16.mxu0 0
        %1792 = vmatpush1.bf16.msra.mxu0 0
        %1793 = vmatprep.subr.bf16.mxu0 0
        %1794 = vmatpush1.bf16.msra.mxu0 0
        %1795 = vmatprep.subr.bf16.mxu0 0
        %1796 = vmatpush1.bf16.msra.mxu0 0
        %1797 = vmatprep.mubr.bf16.mxu0 0
        %1798 = vmatmul.mubr.bf16.gmra.mrb[0].mxu0 %v1763
        %v1799 = vpop.f32.mrb[0].mxu0
        %v1800 = vadd.f32 %v1748, %v1799
        %v1801 = vpop.f32.mrb[0].mxu0
        %v1802 = vpop.f32.mrb[0].mxu0
        %v1803 = vpop.f32.mrb[0].mxu0
        %1804 = vdwg.mxu0
        %v1805 = vadd.f32 %v1210, %v1800
        %v1806 = vld [vmem:[%s901] sm:$0x1]
        %v1807 = vld [vmem:[%s909] sm:$0x1]
        %v1808 = vsel %vm1235, %v1805, 0.0
        %1809 = vadd.xlane.f32.xlu0 %v1808
        %v1810 = vpop.xlane.xlu0 %1809
        %v1811 = vrcp.pop 32.0
        %v1812 = vmul.f32 %v1810, %v1811
        %v1813 = vsub.f32 %v1805, %v1812
        %v1814 = vmul.f32 %v1813, %v1813
        %v1815 = vsel %vm1235, %v1814, 0.0
        %1816 = vadd.xlane.f32.xlu0 %v1815
        %v1817 = vpop.xlane.xlu0 %1816
        %v1818 = vmul.f32 %v1817, %v1811
        %v1819 = vadd.f32 %v1818, 1e-05
        %v1820 = vrsqrt.pop %v1819
        %v1821 = vmul.f32 %v1813, %v1820
        %v1823 = vlaneseq
        %v1824 = vshrl.u32 %v1823, 7
        %v1825 = vsub.s32 0, %v1824
        %v1826 = vrot.slane %v1806, %v1825
        %v1828 = vmul.f32 %v1821, %v1826
        %v1830 = vlaneseq
        %v1831 = vshrl.u32 %v1830, 7
        %v1832 = vsub.s32 0, %v1831
        %v1833 = vrot.slane %v1807, %v1832
        %v1835 = vadd.f32 %v1828, %v1833
        %v1836 = vpack.c.bf16 %v1835, %v1835
        %v1837 = vld [vmem:[%s1108] sm:$0xf]
        %v1838 = vld [vmem:[%s1108 + $0x4] sm:$0xf]
        %v1839 = vld [vmem:[%s1108 + $0x8] sm:$0xf]
        %v1840 = vld [vmem:[%s1108 + $0xc] sm:$0xf]
        %v1841 = vld [vmem:[%s885] sm:$0x1]
        %v1843 = vlaneseq
        %v1844 = vshrl.u32 %v1843, 7
        %v1845 = vsub.s32 0, %v1844
        %v1846 = vrot.slane %v1841, %v1845
        %v1852 = vunpack.c.l.b16 %v1837
        %v1853 = vunpack.c.l.b16 %v1838
        %v1854 = vunpack.c.l.b16 %v1839
        %v1855 = vunpack.c.l.b16 %v1840
        %v1856 = vpack.c.b16 %v1853, %v1852
        %v1857 = vpack.c.b16 %v1855, %v1854
        %v1861 = vsel %vm1235, %v1836, 0
        %1863 = vmatprep.subr.bf16.mxu0 0
        %1864 = vmatpush1.bf16.msra.mxu0 %v1856
        %1865 = vmatprep.subr.bf16.mxu0 0
        %1866 = vmatpush1.bf16.msra.mxu0 %v1857
        %1867 = vmatprep.subr.bf16.mxu0 0
        %1868 = vmatpush1.bf16.msra.mxu0 0
        %1869 = vmatprep.subr.bf16.mxu0 0
        %1870 = vmatpush1.bf16.msra.mxu0 0
        %1871 = vmatprep.subr.bf16.mxu0 0
        %1872 = vmatpush1.bf16.msra.mxu0 0
        %1873 = vmatprep.subr.bf16.mxu0 0
        %1874 = vmatpush1.bf16.msra.mxu0 0
        %1875 = vmatprep.subr.bf16.mxu0 0
        %1876 = vmatpush1.bf16.msra.mxu0 0
        %1877 = vmatprep.subr.bf16.mxu0 0
        %1878 = vmatpush1.bf16.msra.mxu0 0
        %1879 = vmatprep.subr.bf16.mxu0 0
        %1880 = vmatpush1.bf16.msra.mxu0 0
        %1881 = vmatprep.subr.bf16.mxu0 0
        %1882 = vmatpush1.bf16.msra.mxu0 0
        %1883 = vmatprep.subr.bf16.mxu0 0
        %1884 = vmatpush1.bf16.msra.mxu0 0
        %1885 = vmatprep.subr.bf16.mxu0 0
        %1886 = vmatpush1.bf16.msra.mxu0 0
        %1887 = vmatprep.subr.bf16.mxu0 0
        %1888 = vmatpush1.bf16.msra.mxu0 0
        %1889 = vmatprep.subr.bf16.mxu0 0
        %1890 = vmatpush1.bf16.msra.mxu0 0
        %1891 = vmatprep.subr.bf16.mxu0 0
        %1892 = vmatpush1.bf16.msra.mxu0 0
        %1893 = vmatprep.subr.bf16.mxu0 0
        %1894 = vmatpush1.bf16.msra.mxu0 0
        %1895 = vmatprep.mubr.bf16.mxu0 0
        %1896 = vmatmul.mubr.bf16.gmra.mrb[0].mxu0 %v1861
        %v1897 = vpop.f32.mrb[0].mxu0
        %v1898 = vadd.f32 %v1846, %v1897
        %v1899 = vpop.f32.mrb[0].mxu0
        %v1900 = vpop.f32.mrb[0].mxu0
        %v1901 = vpop.f32.mrb[0].mxu0
        %1902 = vdwg.mxu0
        %v1903 = vmax.f32 %v1898, 0.0
        %v1904 = vpack.c.bf16 %v1903, %v1903
        %v1905 = vld [vmem:[%s1117] sm:$0xf]
        %v1906 = vld [vmem:[%s1117 + $0x4] sm:$0xf]
        %v1907 = vld [vmem:[%s1117 + $0x8] sm:$0xf]
        %v1908 = vld [vmem:[%s1117 + $0xc] sm:$0xf]
        %v1909 = vld [vmem:[%s1117 + $0x10] sm:$0xf]
        %v1910 = vld [vmem:[%s1117 + $0x14] sm:$0xf]
        %v1911 = vld [vmem:[%s1117 + $0x18] sm:$0xf]
        %v1912 = vld [vmem:[%s1117 + $0x1c] sm:$0xf]
        %v1913 = vld [vmem:[%s893] sm:$0x1]
        %v1915 = vlaneseq
        %v1916 = vshrl.u32 %v1915, 7
        %v1917 = vsub.s32 0, %v1916
        %v1918 = vrot.slane %v1913, %v1917
        %v1928 = vunpack.c.l.b16 %v1905
        %v1929 = vunpack.c.l.b16 %v1906
        %v1930 = vunpack.c.l.b16 %v1907
        %v1931 = vunpack.c.l.b16 %v1908
        %v1932 = vunpack.c.l.b16 %v1909
        %v1933 = vunpack.c.l.b16 %v1910
        %v1934 = vunpack.c.l.b16 %v1911
        %v1935 = vunpack.c.l.b16 %v1912
        %v1936 = vpack.c.b16 %v1929, %v1928
        %v1937 = vpack.c.b16 %v1931, %v1930
        %v1938 = vpack.c.b16 %v1933, %v1932
        %v1939 = vpack.c.b16 %v1935, %v1934
        %vm1944 = vcmask 523264
        %v1946 = vsel %vm1944, %v1904, 0
        %1948 = vmatprep.subr.bf16.mxu0 0
        %1949 = vmatpush1.bf16.msra.mxu0 %v1936
        %1950 = vmatprep.subr.bf16.mxu0 0
        %1951 = vmatpush1.bf16.msra.mxu0 %v1937
        %1952 = vmatprep.subr.bf16.mxu0 0
        %1953 = vmatpush1.bf16.msra.mxu0 %v1938
        %1954 = vmatprep.subr.bf16.mxu0 0
        %1955 = vmatpush1.bf16.msra.mxu0 %v1939
        %1956 = vmatprep.subr.bf16.mxu0 0
        %1957 = vmatpush1.bf16.msra.mxu0 0
        %1958 = vmatprep.subr.bf16.mxu0 0
        %1959 = vmatpush1.bf16.msra.mxu0 0
        %1960 = vmatprep.subr.bf16.mxu0 0
        %1961 = vmatpush1.bf16.msra.mxu0 0
        %1962 = vmatprep.subr.bf16.mxu0 0
        %1963 = vmatpush1.bf16.msra.mxu0 0
        %1964 = vmatprep.subr.bf16.mxu0 0
        %1965 = vmatpush1.bf16.msra.mxu0 0
        %1966 = vmatprep.subr.bf16.mxu0 0
        %1967 = vmatpush1.bf16.msra.mxu0 0
        %1968 = vmatprep.subr.bf16.mxu0 0
        %1969 = vmatpush1.bf16.msra.mxu0 0
        %1970 = vmatprep.subr.bf16.mxu0 0
        %1971 = vmatpush1.bf16.msra.mxu0 0
        %1972 = vmatprep.subr.bf16.mxu0 0
        %1973 = vmatpush1.bf16.msra.mxu0 0
        %1974 = vmatprep.subr.bf16.mxu0 0
        %1975 = vmatpush1.bf16.msra.mxu0 0
        %1976 = vmatprep.subr.bf16.mxu0 0
        %1977 = vmatpush1.bf16.msra.mxu0 0
        %1978 = vmatprep.subr.bf16.mxu0 0
        %1979 = vmatpush1.bf16.msra.mxu0 0
        %1980 = vmatprep.mubr.bf16.mxu0 0
        %1981 = vmatmul.mubr.bf16.gmra.mrb[0].mxu0 %v1946
        %v1982 = vpop.f32.mrb[0].mxu0
        %v1983 = vadd.f32 %v1918, %v1982
        %v1984 = vpop.f32.mrb[0].mxu0
        %v1985 = vpop.f32.mrb[0].mxu0
        %v1986 = vpop.f32.mrb[0].mxu0
        %1987 = vdwg.mxu0
        %v1988 = vadd.f32 %v1835, %v1983
        %v1989 = vld [vmem:[%s917] sm:$0x1]
        %v1990 = vld [vmem:[%s925] sm:$0x1]
        %v1991 = vsel %vm1235, %v1988, 0.0
        %1992 = vadd.xlane.f32.xlu0 %v1991
        %v1993 = vpop.xlane.xlu0 %1992
        %v1994 = vmul.f32 %v1993, %v1811
        %v1995 = vsub.f32 %v1988, %v1994
        %v1996 = vmul.f32 %v1995, %v1995
        %v1997 = vsel %vm1235, %v1996, 0.0
        %1998 = vadd.xlane.f32.xlu0 %v1997
        %v1999 = vpop.xlane.xlu0 %1998
        %v2000 = vmul.f32 %v1999, %v1811
        %v2001 = vadd.f32 %v2000, 1e-05
        %v2002 = vrsqrt.pop %v2001
        %v2003 = vmul.f32 %v1995, %v2002
        %v2005 = vlaneseq
        %v2006 = vshrl.u32 %v2005, 7
        %v2007 = vsub.s32 0, %v2006
        %v2008 = vrot.slane %v1989, %v2007
        %v2010 = vmul.f32 %v2003, %v2008
        %v2012 = vlaneseq
        %v2013 = vshrl.u32 %v2012, 7
        %v2014 = vsub.s32 0, %v2013
        %v2015 = vrot.slane %v1990, %v2014
        %v2017 = vadd.f32 %v2010, %v2015
        %v2018 = vld [vmem:[#allocation3] sm:$0xff]
        %v2019 = vadd.f32 %v2018, %v2017
        %2020 = vst.msk [vmem:[#allocation3] sm:$0xff] %vm1235, %v2019
        // Predicated region
        $region141: #{speaker_trm_forward.1} parent=95 // pred_check
          %p2021 = pneg %p1181
        $region142: #{speaker_trm_forward.1} parent=95 // pred_check_branch
          %2023 = sbr.rel (%p2021) target = $region144
        $region143: #{speaker_trm_forward.1} parent=95 // pred_region
          %v2024 = vld [vmem:[#allocation3] sm:$0xff]
          %2025 = vst.msk [vmem:[#allocation2] sm:$0xff] %vm1235, %v2024
        $region144: #{speaker_trm_forward.1} parent=95 // pred_fallthru
          _
        %p2026 = scmp.eq.s32.totalorder %s51, 1
        %p2027 = pnand %p2026, %p1181
        %p2028 = pneg %p2027
        // Predicated region
        $region145: #{speaker_trm_forward.1} parent=95 // pred_check
          _
        $region146: #{speaker_trm_forward.1} parent=95 // pred_check_branch
          %2030 = sbr.rel (%p2027) target = $region148
        $region147: #{speaker_trm_forward.1} parent=95 // pred_region
          %v2031 = vld [vmem:[#allocation3] sm:$0xff]
          %v2032 = vld [vmem:[%s17] sm:$0x1]
          %v2033 = vld [vmem:[#allocation17] sm:$0x1]
          %v2034 = vsel %vm1235, %v2031, 0.0
          %2035 = vadd.xlane.f32.xlu0 %v2034
          %v2036 = vpop.xlane.xlu0 %2035
          %v2037 = vmul.f32 %v2036, %v1811
          %v2038 = vsub.f32 %v2031, %v2037
          %v2039 = vmul.f32 %v2038, %v2038
          %v2040 = vsel %vm1235, %v2039, 0.0
          %2041 = vadd.xlane.f32.xlu0 %v2040
          %v2042 = vpop.xlane.xlu0 %2041
          %v2043 = vmul.f32 %v2042, %v1811
          %v2044 = vadd.f32 %v2043, 1e-05
          %v2045 = vrsqrt.pop %v2044
          %v2046 = vmul.f32 %v2038, %v2045
          %v2048 = vlaneseq
          %v2049 = vshrl.u32 %v2048, 7
          %v2050 = vsub.s32 0, %v2049
          %v2051 = vrot.slane %v2032, %v2050
          %v2053 = vmul.f32 %v2046, %v2051
          %v2055 = vlaneseq
          %v2056 = vshrl.u32 %v2055, 7
          %v2057 = vsub.s32 0, %v2056
          %v2058 = vrot.slane %v2033, %v2057
          %v2060 = vadd.f32 %v2053, %v2058
          %2061 = vst.msk [vmem:[%s1121] sm:$0xff] %vm1235, %v2060
        $region148: #{speaker_trm_forward.1} parent=95 // pred_fallthru
          _
        %p2062 = scmp.lt.s32.totalorder %s50, 1
        %s2063 = scalar_select %p2062, %s50, 1
        %s2064 = smul.addr %s2063, 8
        %s2065 = scalar_lea.vmem %s19, %s2064
        // Predicated region
        $region149: #{speaker_trm_forward.1} parent=95 // pred_check
          %p2066 = pneg %p590
        $region150: #{speaker_trm_forward.1} parent=95 // pred_check_branch
          %2068 = sbr.rel (%p2066) target = $region152
        $region151: #{speaker_trm_forward.1} parent=95 // pred_region
          _
        $region152: #{speaker_trm_forward.1} parent=95 // pred_fallthru
          _
      $region96: #{speaker_trm_forward.1} parent=5 // pred_fallthru
        _
      %p2069 = scmp.le.s32.totalorder 2, %s40
      // Predicated region
      $region153: #{speaker_trm_forward.1} parent=5 // pred_check
        %p2070 = pneg %p2069
      $region154: #{speaker_trm_forward.1} parent=5 // pred_check_branch
        %2072 = sbr.rel (%p2070) target = $region156
      $region155: #{speaker_trm_forward.1} parent=5 // pred_region
        %s2073 = ssub.s32 %s40, 2
        // Predicated region
        $region157: #{speaker_trm_forward.1} parent=155 // pred_check
          %p2074 = pneg %p596
        $region158: #{speaker_trm_forward.1} parent=155 // pred_check_branch
          %2076 = sbr.rel (%p2074) target = $region160
        $region159: #{speaker_trm_forward.1} parent=155 // pred_region
          %p2077 = scmp.lt.s32.totalorder %s53, 1
          %s2078 = scalar_select %p2077, %s53, 1
          %s2079 = smul.addr %s2078, 8
          %s2080 = scalar_lea.vmem %s19, %s2079
        $region160: #{speaker_trm_forward.1} parent=155 // pred_fallthru
          _
      $region156: #{speaker_trm_forward.1} parent=5 // pred_fallthru
        _
    $region6: #{speaker_trm_forward.1} parent=1 // loop_footer
      %s44 = sadd.s32 1, %s40
    $region7: #{speaker_trm_forward.1} parent=1 // loop_footer_branch
      %39 = sbr.rel target = $region3
    $region8: #{speaker_trm_forward.1} parent=1 // loop_exit
      _
    %2081 = vsyncpa [#allocation5], 1
    %s2082 = scalar_lea.sflag [#allocation5], 1
    %2083 = vsyncpa %s2082, 1
    %2084 = vsyncpa [#allocation7], 1
    %s2085 = scalar_lea.sflag [#allocation7], 1
    %2086 = vsyncpa %s2085, 1
    %2087 = vsyncpa [#allocation10], 1
    %s2088 = scalar_lea.sflag [#allocation10], 1
    %2089 = vsyncpa %s2088, 1
    %2090 = vsyncpa [#allocation13], 1
    %s2091 = scalar_lea.sflag [#allocation13], 1
    %2092 = vsyncpa %s2091, 1
    %2093 = vsyncpa [#allocation16], 1
    %s2094 = scalar_lea.sflag [#allocation16], 1
    %2095 = vsyncpa %s2094, 1

</llo_original>
